<compile_context>
chip_gen: v7x
topology: tpu7x:2x2x1
jax: 0.10.0
libtpu: 0.0.40
codegen_flags: <defaults>
</compile_context>

<pallas_src>
import functools

import jax
import jax.numpy as jnp
from jax.experimental import pallas as pl
from jax.experimental.pallas import tpu as pltpu

# ---- tiny "bert-base-like" config (scaled down) --------------------------------
VOCAB = 100
MAX_POS = 16
TYPE_VOCAB = 2
HIDDEN = 32
NUM_HEADS = 4
HEAD_DIM = HIDDEN // NUM_HEADS
INTERMEDIATE = 64
NUM_LAYERS = 2
NUM_CLASSES = 3
LN_EPS = 1e-12


# ---- in-kernel helpers (fp32) ----------------------------------------------------
def _ln(h, g, b):
    mu = jnp.mean(h, axis=-1, keepdims=True)
    var = jnp.mean((h - mu) ** 2, axis=-1, keepdims=True)
    return (h - mu) * jax.lax.rsqrt(var + LN_EPS) * g + b


def _gelu(y):
    # BERT GELU, tanh approximation (tanh runs on the EUP slot).
    # TODO(synk): HF BertModel's default is the exact erf GELU; tanh form differs ~1e-3.
    return 0.5 * y * (1.0 + jnp.tanh(0.7978845608028654 * (y + 0.044715 * y * y * y)))


# ---- fused encoder kernel: all layers, one pallas_call ---------------------------
def _bert_encoder_kernel(
    x_ref, bias_ref, embg_ref, embb_ref,
    wqkv_ref, bqkv_ref, wo_ref, bo_ref,
    ln1g_ref, ln1b_ref, wi_ref, bi_ref, wf_ref, bf_ref, ln2g_ref, ln2b_ref,
    o_ref,
    acc_ref, attn_ref,
    *, batch, seq, num_heads, head_dim,
):
    hidden = num_heads * head_dim
    scale = 1.0 / float(head_dim) ** 0.5
    layer = pl.program_id(0)

    # ---- layer 0: fused embedding LayerNorm (replaces the standalone launch) ----
    @pl.when(layer == 0)
    def _():
        acc_ref[...] = _ln(x_ref[...], embg_ref[...], embb_ref[...])

    x = acc_ref[...]                          # (M, H) fp32, VMEM-resident across layers
    x_bf = x.astype(jnp.bfloat16)

    # ---- fused QKV projection: one MXU pass, bf16 operands, fp32 accumulation ----
    qkv = jnp.dot(x_bf, wqkv_ref[...], preferred_element_type=jnp.float32) + bqkv_ref[...]
    q = qkv[:, 0:hidden]
    k = qkv[:, hidden:2 * hidden]
    v = qkv[:, 2 * hidden:3 * hidden]

    wo = wo_ref[...]                          # (H, H) bf16

    # ---- multi-head self-attention (batch*heads = 8 -> static unroll is fine) ----
    for b in range(batch):
        r0 = b * seq
        # hoisted (1,S)->(S,S) mask broadcast, reused by every head of this batch row
        bias_sq = jnp.broadcast_to(bias_ref[b:b + 1, :], (seq, seq))
        ctx_heads = []
        for h in range(num_heads):
            c0 = h * head_dim
            qh = q[r0:r0 + seq, c0:c0 + head_dim].astype(jnp.bfloat16)   # (S, D)
            kh = k[r0:r0 + seq, c0:c0 + head_dim].astype(jnp.bfloat16)   # (S, D)
            vh = v[r0:r0 + seq, c0:c0 + head_dim].astype(jnp.bfloat16)   # (S, D)
            # contract head dim of both operands directly (no explicit transpose)
            s = jax.lax.dot_general(
                qh, kh, (((1,), (1,)), ((), ())),
                preferred_element_type=jnp.float32) * scale
            s = s + bias_sq                                              # (S, S)
            m = jnp.max(s, axis=-1, keepdims=True)
            p = jnp.exp(s - m)
            p = p * pl.reciprocal(jnp.sum(p, axis=-1, keepdims=True), approx=True)
            ctx_heads.append(
                jnp.dot(p.astype(jnp.bfloat16), vh,
                        preferred_element_type=jnp.float32))             # (S, D)
        # lane-concat the 4 (S,8) heads into one (S,32) tile (stays inside one vreg)
        ctx = jnp.concatenate(ctx_heads, axis=-1)
        # single (S,H)@(H,H) output projection per batch, written straight into
        # its rows of the preallocated scratch (no sublane concat).
        attn_ref[r0:r0 + seq, :] = jnp.dot(ctx.astype(jnp.bfloat16), wo,
                                           preferred_element_type=jnp.float32)

    # ---- residual + LayerNorm 1 ----
    attn_out = attn_ref[...] + bo_ref[...]
    x1 = _ln(attn_out + x, ln1g_ref[...], ln1b_ref[...])

    # ---- feed-forward (GELU) + residual + LayerNorm 2 ----
    inter = jnp.dot(x1.astype(jnp.bfloat16), wi_ref[...],
                    preferred_element_type=jnp.float32) + bi_ref[...]
    inter = _gelu(inter)
    ffn = jnp.dot(inter.astype(jnp.bfloat16), wf_ref[...],
                  preferred_element_type=jnp.float32) + bf_ref[...]
    x2 = _ln(ffn + x1, ln2g_ref[...], ln2b_ref[...])

    acc_ref[...] = x2        # carry to next layer (stays in VMEM)
    o_ref[...] = x2          # last iteration's value is what gets written back


def bert_encoder(x, mask_bias, lw, emb_ln_g, emb_ln_b, batch, seq):
    M, H = x.shape
    I = INTERMEDIATE
    L = NUM_LAYERS

    def rep(shape):          # replicated across the layer axis
        return pl.BlockSpec(shape, lambda l: (0,) * len(shape))

    def per_layer(shape):    # leading layer dim: selected by l, squeezed in-kernel
        nd = len(shape)
        return pl.BlockSpec((None,) + shape, lambda l, nd=nd: (l,) + (0,) * nd)

    return pl.pallas_call(
        functools.partial(_bert_encoder_kernel, batch=batch, seq=seq,
                          num_heads=NUM_HEADS, head_dim=HEAD_DIM),
        out_shape=jax.ShapeDtypeStruct((M, H), jnp.float32),
        grid=(L,),
        in_specs=[
            rep((M, H)),                 # x (post-embedding, pre-LN)
            rep((batch, seq)),           # additive attention-mask bias
            rep((1, H)), rep((1, H)),    # embedding LN gamma / beta
            per_layer((H, 3 * H)), per_layer((1, 3 * H)),     # fused qkv
            per_layer((H, H)), per_layer((1, H)),             # output proj
            per_layer((1, H)), per_layer((1, H)),             # ln1
            per_layer((H, I)), per_layer((1, I)),             # ffn in
            per_layer((I, H)), per_layer((1, H)),             # ffn out
            per_layer((1, H)), per_layer((1, H)),             # ln2
        ],
        out_specs=rep((M, H)),
        scratch_shapes=[
            pltpu.VMEM((M, H), jnp.float32),   # persistent activations across layers
            pltpu.VMEM((M, H), jnp.float32),   # attention output rows
        ],
        compiler_params=pltpu.CompilerParams(dimension_semantics=("arbitrary",)),
    )(
        x, mask_bias, emb_ln_g.reshape(1, H), emb_ln_b.reshape(1, H),
        lw["wqkv"], lw["bqkv"],
        lw["wo"], lw["bo"],
        lw["ln1_g"], lw["ln1_b"],
        lw["wi"], lw["bi"],
        lw["wf"], lw["bf"],
        lw["ln2_g"], lw["ln2_b"],
    )


# ---- parameters (deterministic synthetic init, stacked per-layer) ----------------
def init_params(key):
    def normal(k, shape, scale=0.02):
        return scale * jax.random.normal(k, shape, dtype=jnp.float32)

    keys = jax.random.split(key, 8 + NUM_LAYERS)
    params = {
        "word_emb": normal(keys[0], (VOCAB, HIDDEN)),
        "pos_emb": normal(keys[1], (MAX_POS, HIDDEN)),
        "type_emb": normal(keys[2], (TYPE_VOCAB, HIDDEN)),
        "emb_ln_g": jnp.ones((HIDDEN,), jnp.float32),
        "emb_ln_b": jnp.zeros((HIDDEN,), jnp.float32),
        "pool_w": normal(keys[3], (HIDDEN, HIDDEN)),
        "pool_b": jnp.zeros((HIDDEN,), jnp.float32),
        "cls_w": normal(keys[4], (HIDDEN, NUM_CLASSES)),
        "cls_b": jnp.zeros((NUM_CLASSES,), jnp.float32),
    }
    wqkv, wo, wi, wf = [], [], [], []
    for l in range(NUM_LAYERS):
        lk = jax.random.split(keys[8 + l], 6)
        # q/k/v merged into one (H, 3H) matrix -> single MXU pass in the kernel
        wqkv.append(jnp.concatenate([normal(lk[0], (HIDDEN, HIDDEN)),
                                     normal(lk[1], (HIDDEN, HIDDEN)),
                                     normal(lk[2], (HIDDEN, HIDDEN))], axis=1))
        wo.append(normal(lk[3], (HIDDEN, HIDDEN)))
        wi.append(normal(lk[4], (HIDDEN, INTERMEDIATE)))
        wf.append(normal(lk[5], (INTERMEDIATE, HIDDEN)))

    L = NUM_LAYERS
    params["layers"] = {
        "wqkv": jnp.stack(wqkv),
        "bqkv": jnp.zeros((L, 1, 3 * HIDDEN), jnp.float32),
        "wo": jnp.stack(wo),
        "bo": jnp.zeros((L, 1, HIDDEN), jnp.float32),
        "ln1_g": jnp.ones((L, 1, HIDDEN), jnp.float32),
        "ln1_b": jnp.zeros((L, 1, HIDDEN), jnp.float32),
        "wi": jnp.stack(wi),
        "bi": jnp.zeros((L, 1, INTERMEDIATE), jnp.float32),
        "wf": jnp.stack(wf),
        "bf": jnp.zeros((L, 1, HIDDEN), jnp.float32),
        "ln2_g": jnp.ones((L, 1, HIDDEN), jnp.float32),
        "ln2_b": jnp.zeros((L, 1, HIDDEN), jnp.float32),
    }
    return params


# ---- full forward (SimpleBert.forward) --------------------------------------------
@jax.jit
def simple_bert_forward(params, input_ids, attention_mask):
    B, S = input_ids.shape
    H = HIDDEN

    # Embeddings (gathers are XLA glue); the embedding LayerNorm is fused into the
    # encoder kernel's first grid step.
    emb = (params["word_emb"][input_ids]
           + params["pos_emb"][None, :S, :]
           + params["type_emb"][0][None, None, :])           # token_type_ids = 0
    x = emb.reshape(B * S, H)

    # Extended attention mask -> additive bias (B, S), HF convention (-10000 for pad).
    mask_bias = (1.0 - attention_mask.astype(jnp.float32)) * -10000.0

    # bf16 matmul weights: native MXU dtype, half the DMA/VMEM bytes.
    lw = dict(params["layers"])
    for name in ("wqkv", "wo", "wi", "wf"):
        lw[name] = lw[name].astype(jnp.bfloat16)

    # ONE Pallas launch: all encoder layers + embedding LayerNorm.
    x = bert_encoder(x, mask_bias, lw, params["emb_ln_g"], params["emb_ln_b"], B, S)

    # Pooler + classifier: tiny (B=2) matrices -> plain JAX (XLA fuses these).
    cls = x.reshape(B, S, H)[:, 0, :]                         # [CLS] token
    pooled = jnp.tanh(cls @ params["pool_w"] + params["pool_b"])
    logits = pooled @ params["cls_w"] + params["cls_b"]       # (B, NUM_CLASSES)
    return logits


if __name__ == "__main__":
    key = jax.random.PRNGKey(0)
    pkey, ikey = jax.random.split(key)
    params = init_params(pkey)

    B, S = 2, 8
    input_ids = jax.random.randint(ikey, (B, S), 0, VOCAB, dtype=jnp.int32)
    attention_mask = jnp.array(
        [[1, 1, 1, 1, 1, 1, 1, 1],
         [1, 1, 1, 1, 1, 0, 0, 0]], dtype=jnp.int32)

    logits = simple_bert_forward(params, input_ids, attention_mask)
    jax.block_until_ready(logits)
    assert logits.shape == (B, NUM_CLASSES) and logits.dtype == jnp.float32
    print("KERNEL_OK")
</pallas_src>

<mosaic_0001>
module attributes {stable_mosaic.version = 11 : i64} {
  func.func @_bert_encoder_kernel(%arg0: i32, %arg1: memref<16x32xf32, #tpu.memory_space<vmem>>, %arg2: memref<2x8xf32, #tpu.memory_space<vmem>>, %arg3: memref<1x32xf32, #tpu.memory_space<vmem>>, %arg4: memref<1x32xf32, #tpu.memory_space<vmem>>, %arg5: memref<1x32x96xbf16, #tpu.memory_space<vmem>>, %arg6: memref<1x1x96xf32, #tpu.memory_space<vmem>>, %arg7: memref<1x32x32xbf16, #tpu.memory_space<vmem>>, %arg8: memref<1x1x32xf32, #tpu.memory_space<vmem>>, %arg9: memref<1x1x32xf32, #tpu.memory_space<vmem>>, %arg10: memref<1x1x32xf32, #tpu.memory_space<vmem>>, %arg11: memref<1x32x64xbf16, #tpu.memory_space<vmem>>, %arg12: memref<1x1x64xf32, #tpu.memory_space<vmem>>, %arg13: memref<1x64x32xbf16, #tpu.memory_space<vmem>>, %arg14: memref<1x1x32xf32, #tpu.memory_space<vmem>>, %arg15: memref<1x1x32xf32, #tpu.memory_space<vmem>>, %arg16: memref<1x1x32xf32, #tpu.memory_space<vmem>>, %arg17: memref<16x32xf32, #tpu.memory_space<vmem>>, %arg18: memref<16x32xf32, #tpu.memory_space<vmem>>, %arg19: memref<16x32xf32, #tpu.memory_space<vmem>>) attributes {dimension_semantics = [#tpu.dimension_semantics<arbitrary>], iteration_bounds = array<i64: 2>, scalar_prefetch = 0 : i64, scratch_operands = 2 : i64, tpu.core_type = #tpu.core_type<tc>, window_params = [{pipeline_mode = #tpu.pipeline_mode<synchronous>, transform_indices = @transform_0, window_bounds = array<i64: 16, 32>}, {pipeline_mode = #tpu.pipeline_mode<synchronous>, transform_indices = @transform_1, window_bounds = array<i64: 2, 8>}, {pipeline_mode = #tpu.pipeline_mode<synchronous>, transform_indices = @transform_2, window_bounds = array<i64: 1, 32>}, {pipeline_mode = #tpu.pipeline_mode<synchronous>, transform_indices = @transform_3, window_bounds = array<i64: 1, 32>}, {transform_indices = @transform_4, window_bounds = array<i64: 1, 32, 96>}, {transform_indices = @transform_5, window_bounds = array<i64: 1, 1, 96>}, {transform_indices = @transform_6, window_bounds = array<i64: 1, 32, 32>}, {transform_indices = @transform_7, window_bounds = array<i64: 1, 1, 32>}, {transform_indices = @transform_8, window_bounds = array<i64: 1, 1, 32>}, {transform_indices = @transform_9, window_bounds = array<i64: 1, 1, 32>}, {transform_indices = @transform_10, window_bounds = array<i64: 1, 32, 64>}, {transform_indices = @transform_11, window_bounds = array<i64: 1, 1, 64>}, {transform_indices = @transform_12, window_bounds = array<i64: 1, 64, 32>}, {transform_indices = @transform_13, window_bounds = array<i64: 1, 1, 32>}, {transform_indices = @transform_14, window_bounds = array<i64: 1, 1, 32>}, {transform_indices = @transform_15, window_bounds = array<i64: 1, 1, 32>}, {pipeline_mode = #tpu.pipeline_mode<synchronous>, transform_indices = @transform_16, window_bounds = array<i64: 16, 32>}]} {
    %c0_i32 = arith.constant 0 : i32
    %0 = arith.cmpi eq, %arg0, %c0_i32 : i32
    %1 = arith.extui %0 : i1 to i32
    %c0_i32_0 = arith.constant 0 : i32
    %2 = arith.cmpi ne, %1, %c0_i32_0 : i32
    scf.if %2 {
      %c0_108 = arith.constant 0 : index
      %c0_109 = arith.constant 0 : index
      %297 = vector.load %arg1[%c0_108, %c0_109] : memref<16x32xf32, #tpu.memory_space<vmem>>, vector<16x32xf32>
      %c0_110 = arith.constant 0 : index
      %c0_111 = arith.constant 0 : index
      %298 = vector.load %arg3[%c0_110, %c0_111] : memref<1x32xf32, #tpu.memory_space<vmem>>, vector<1x32xf32>
      %c0_112 = arith.constant 0 : index
      %c0_113 = arith.constant 0 : index
      %299 = vector.load %arg4[%c0_112, %c0_113] : memref<1x32xf32, #tpu.memory_space<vmem>>, vector<1x32xf32>
      %cst_114 = arith.constant dense<0.000000e+00> : vector<16xf32>
      %300 = vector.multi_reduction <add>, %297, %cst_114 [1] : vector<16x32xf32> to vector<16xf32>
      %301 = vector.shape_cast %300 : vector<16xf32> to vector<16x1xf32>
      %cst_115 = arith.constant 3.200000e+01 : f32
      %302 = vector.broadcast %cst_115 : f32 to vector<16x1xf32>
      %303 = arith.divf %301, %302 : vector<16x1xf32>
      %304 = vector.broadcast %303 : vector<16x1xf32> to vector<16x32xf32>
      %305 = arith.subf %297, %304 : vector<16x32xf32>
      %306 = arith.mulf %305, %305 : vector<16x32xf32>
      %cst_116 = arith.constant dense<0.000000e+00> : vector<16xf32>
      %307 = vector.multi_reduction <add>, %306, %cst_116 [1] : vector<16x32xf32> to vector<16xf32>
      %308 = vector.shape_cast %307 : vector<16xf32> to vector<16x1xf32>
      %cst_117 = arith.constant 3.200000e+01 : f32
      %309 = vector.broadcast %cst_117 : f32 to vector<16x1xf32>
      %310 = arith.divf %308, %309 : vector<16x1xf32>
      %311 = vector.broadcast %303 : vector<16x1xf32> to vector<16x32xf32>
      %312 = arith.subf %297, %311 : vector<16x32xf32>
      %cst_118 = arith.constant 9.99999996E-13 : f32
      %313 = vector.broadcast %cst_118 : f32 to vector<16x1xf32>
      %314 = arith.addf %310, %313 : vector<16x1xf32>
      %315 = math.rsqrt %314 : vector<16x1xf32>
      %316 = vector.broadcast %315 : vector<16x1xf32> to vector<16x32xf32>
      %317 = arith.mulf %312, %316 : vector<16x32xf32>
      %318 = vector.broadcast %298 : vector<1x32xf32> to vector<16x32xf32>
      %319 = arith.mulf %317, %318 : vector<16x32xf32>
      %320 = vector.broadcast %299 : vector<1x32xf32> to vector<16x32xf32>
      %321 = arith.addf %319, %320 : vector<16x32xf32>
      %c0_119 = arith.constant 0 : index
      %c0_120 = arith.constant 0 : index
      %322 = vector.load %arg18[%c0_119, %c0_120] : memref<16x32xf32, #tpu.memory_space<vmem>>, vector<16x32xf32>
      tpu.vector_store %arg18[%c0_119, %c0_120], %321 {strides = array<i32>} : memref<16x32xf32, #tpu.memory_space<vmem>>, vector<16x32xf32>,
    } else {
    }
    %c0 = arith.constant 0 : index
    %c0_1 = arith.constant 0 : index
    %3 = vector.load %arg18[%c0, %c0_1] : memref<16x32xf32, #tpu.memory_space<vmem>>, vector<16x32xf32>
    %4 = arith.truncf %3 : vector<16x32xf32> to vector<16x32xbf16>
    %c0_2 = arith.constant 0 : index
    %c0_3 = arith.constant 0 : index
    %c0_4 = arith.constant 0 : index
    %5 = vector.load %arg5[%c0_2, %c0_3, %c0_4] : memref<1x32x96xbf16, #tpu.memory_space<vmem>>, vector<1x32x96xbf16>
    %6 = vector.shape_cast %5 : vector<1x32x96xbf16> to vector<32x96xbf16>
    %cst = arith.constant dense<0.000000e+00> : vector<16x96xf32>
    %7 = tpu.matmul %4, %6, %cst {dimension_numbers = #tpu.dot_dimension_numbers<[1], [0], [0], [1], [0, 0, 1, 1], [], []>} : vector<16x32xbf16>, vector<32x96xbf16>, vector<16x96xf32> -> vector<16x96xf32>
    %c0_5 = arith.constant 0 : index
    %c0_6 = arith.constant 0 : index
    %c0_7 = arith.constant 0 : index
    %8 = vector.load %arg6[%c0_5, %c0_6, %c0_7] : memref<1x1x96xf32, #tpu.memory_space<vmem>>, vector<1x1x96xf32>
    %9 = vector.shape_cast %8 : vector<1x1x96xf32> to vector<1x96xf32>
    %10 = vector.broadcast %9 : vector<1x96xf32> to vector<16x96xf32>
    %11 = arith.addf %7, %10 : vector<16x96xf32>
    %12 = vector.extract_strided_slice %11 {offsets = [0, 0], sizes = [16, 32], strides = [1, 1]} : vector<16x96xf32> to vector<16x32xf32>
    %13 = vector.extract_strided_slice %11 {offsets = [0, 32], sizes = [16, 32], strides = [1, 1]} : vector<16x96xf32> to vector<16x32xf32>
    %14 = vector.extract_strided_slice %11 {offsets = [0, 64], sizes = [16, 32], strides = [1, 1]} : vector<16x96xf32> to vector<16x32xf32>
    %c0_8 = arith.constant 0 : index
    %c0_9 = arith.constant 0 : index
    %c0_10 = arith.constant 0 : index
    %15 = vector.load %arg7[%c0_8, %c0_9, %c0_10] : memref<1x32x32xbf16, #tpu.memory_space<vmem>>, vector<1x32x32xbf16>
    %16 = vector.shape_cast %15 : vector<1x32x32xbf16> to vector<32x32xbf16>
    %c0_11 = arith.constant 0 : index
    %c0_12 = arith.constant 0 : index
    %17 = vector.load %arg2[%c0_11, %c0_12] : memref<2x8xf32, #tpu.memory_space<vmem>>, vector<1x8xf32>
    %18 = vector.shape_cast %17 : vector<1x8xf32> to vector<1x8xf32>
    %19 = vector.broadcast %18 : vector<1x8xf32> to vector<8x8xf32>
    %20 = vector.extract_strided_slice %12 {offsets = [0, 0], sizes = [8, 8], strides = [1, 1]} : vector<16x32xf32> to vector<8x8xf32>
    %21 = arith.truncf %20 : vector<8x8xf32> to vector<8x8xbf16>
    %22 = vector.extract_strided_slice %13 {offsets = [0, 0], sizes = [8, 8], strides = [1, 1]} : vector<16x32xf32> to vector<8x8xf32>
    %23 = arith.truncf %22 : vector<8x8xf32> to vector<8x8xbf16>
    %24 = vector.extract_strided_slice %14 {offsets = [0, 0], sizes = [8, 8], strides = [1, 1]} : vector<16x32xf32> to vector<8x8xf32>
    %25 = arith.truncf %24 : vector<8x8xf32> to vector<8x8xbf16>
    %cst_13 = arith.constant dense<0.000000e+00> : vector<8x8xf32>
    %26 = tpu.matmul %21, %23, %cst_13 {dimension_numbers = #tpu.dot_dimension_numbers<[1], [1], [0], [0], [0, 0, 1, 0], [], []>} : vector<8x8xbf16>, vector<8x8xbf16>, vector<8x8xf32> -> vector<8x8xf32>
    %cst_14 = arith.constant 0.353553385 : f32
    %27 = vector.broadcast %cst_14 : f32 to vector<8x8xf32>
    %28 = arith.mulf %26, %27 : vector<8x8xf32>
    %29 = arith.addf %28, %19 : vector<8x8xf32>
    %cst_15 = arith.constant dense<0xFF800000> : vector<8xf32>
    %30 = vector.multi_reduction <maximumf>, %29, %cst_15 [1] : vector<8x8xf32> to vector<8xf32>
    %31 = vector.shape_cast %30 : vector<8xf32> to vector<8x1xf32>
    %32 = vector.broadcast %31 : vector<8x1xf32> to vector<8x8xf32>
    %33 = arith.subf %29, %32 : vector<8x8xf32>
    %34 = math.exp %33 : vector<8x8xf32>
    %cst_16 = arith.constant dense<0.000000e+00> : vector<8xf32>
    %35 = vector.multi_reduction <add>, %34, %cst_16 [1] : vector<8x8xf32> to vector<8xf32>
    %36 = vector.shape_cast %35 : vector<8xf32> to vector<8x1xf32>
    %37 = tpu.reciprocal %36 {approx = true} : vector<8x1xf32> -> vector<8x1xf32>
    %38 = vector.broadcast %37 : vector<8x1xf32> to vector<8x8xf32>
    %39 = arith.mulf %34, %38 : vector<8x8xf32>
    %40 = arith.truncf %39 : vector<8x8xf32> to vector<8x8xbf16>
    %cst_17 = arith.constant dense<0.000000e+00> : vector<8x8xf32>
    %41 = tpu.matmul %40, %25, %cst_17 {dimension_numbers = #tpu.dot_dimension_numbers<[1], [0], [0], [1], [0, 0, 1, 1], [], []>} : vector<8x8xbf16>, vector<8x8xbf16>, vector<8x8xf32> -> vector<8x8xf32>
    %42 = vector.extract_strided_slice %12 {offsets = [0, 8], sizes = [8, 8], strides = [1, 1]} : vector<16x32xf32> to vector<8x8xf32>
    %43 = arith.truncf %42 : vector<8x8xf32> to vector<8x8xbf16>
    %44 = vector.extract_strided_slice %13 {offsets = [0, 8], sizes = [8, 8], strides = [1, 1]} : vector<16x32xf32> to vector<8x8xf32>
    %45 = arith.truncf %44 : vector<8x8xf32> to vector<8x8xbf16>
    %46 = vector.extract_strided_slice %14 {offsets = [0, 8], sizes = [8, 8], strides = [1, 1]} : vector<16x32xf32> to vector<8x8xf32>
    %47 = arith.truncf %46 : vector<8x8xf32> to vector<8x8xbf16>
    %cst_18 = arith.constant dense<0.000000e+00> : vector<8x8xf32>
    %48 = tpu.matmul %43, %45, %cst_18 {dimension_numbers = #tpu.dot_dimension_numbers<[1], [1], [0], [0], [0, 0, 1, 0], [], []>} : vector<8x8xbf16>, vector<8x8xbf16>, vector<8x8xf32> -> vector<8x8xf32>
    %cst_19 = arith.constant 0.353553385 : f32
    %49 = vector.broadcast %cst_19 : f32 to vector<8x8xf32>
    %50 = arith.mulf %48, %49 : vector<8x8xf32>
    %51 = arith.addf %50, %19 : vector<8x8xf32>
    %cst_20 = arith.constant dense<0xFF800000> : vector<8xf32>
    %52 = vector.multi_reduction <maximumf>, %51, %cst_20 [1] : vector<8x8xf32> to vector<8xf32>
    %53 = vector.shape_cast %52 : vector<8xf32> to vector<8x1xf32>
    %54 = vector.broadcast %53 : vector<8x1xf32> to vector<8x8xf32>
    %55 = arith.subf %51, %54 : vector<8x8xf32>
    %56 = math.exp %55 : vector<8x8xf32>
    %cst_21 = arith.constant dense<0.000000e+00> : vector<8xf32>
    %57 = vector.multi_reduction <add>, %56, %cst_21 [1] : vector<8x8xf32> to vector<8xf32>
    %58 = vector.shape_cast %57 : vector<8xf32> to vector<8x1xf32>
    %59 = tpu.reciprocal %58 {approx = true} : vector<8x1xf32> -> vector<8x1xf32>
    %60 = vector.broadcast %59 : vector<8x1xf32> to vector<8x8xf32>
    %61 = arith.mulf %56, %60 : vector<8x8xf32>
    %62 = arith.truncf %61 : vector<8x8xf32> to vector<8x8xbf16>
    %cst_22 = arith.constant dense<0.000000e+00> : vector<8x8xf32>
    %63 = tpu.matmul %62, %47, %cst_22 {dimension_numbers = #tpu.dot_dimension_numbers<[1], [0], [0], [1], [0, 0, 1, 1], [], []>} : vector<8x8xbf16>, vector<8x8xbf16>, vector<8x8xf32> -> vector<8x8xf32>
    %64 = vector.extract_strided_slice %12 {offsets = [0, 16], sizes = [8, 8], strides = [1, 1]} : vector<16x32xf32> to vector<8x8xf32>
    %65 = arith.truncf %64 : vector<8x8xf32> to vector<8x8xbf16>
    %66 = vector.extract_strided_slice %13 {offsets = [0, 16], sizes = [8, 8], strides = [1, 1]} : vector<16x32xf32> to vector<8x8xf32>
    %67 = arith.truncf %66 : vector<8x8xf32> to vector<8x8xbf16>
    %68 = vector.extract_strided_slice %14 {offsets = [0, 16], sizes = [8, 8], strides = [1, 1]} : vector<16x32xf32> to vector<8x8xf32>
    %69 = arith.truncf %68 : vector<8x8xf32> to vector<8x8xbf16>
    %cst_23 = arith.constant dense<0.000000e+00> : vector<8x8xf32>
    %70 = tpu.matmul %65, %67, %cst_23 {dimension_numbers = #tpu.dot_dimension_numbers<[1], [1], [0], [0], [0, 0, 1, 0], [], []>} : vector<8x8xbf16>, vector<8x8xbf16>, vector<8x8xf32> -> vector<8x8xf32>
    %cst_24 = arith.constant 0.353553385 : f32
    %71 = vector.broadcast %cst_24 : f32 to vector<8x8xf32>
    %72 = arith.mulf %70, %71 : vector<8x8xf32>
    %73 = arith.addf %72, %19 : vector<8x8xf32>
    %cst_25 = arith.constant dense<0xFF800000> : vector<8xf32>
    %74 = vector.multi_reduction <maximumf>, %73, %cst_25 [1] : vector<8x8xf32> to vector<8xf32>
    %75 = vector.shape_cast %74 : vector<8xf32> to vector<8x1xf32>
    %76 = vector.broadcast %75 : vector<8x1xf32> to vector<8x8xf32>
    %77 = arith.subf %73, %76 : vector<8x8xf32>
    %78 = math.exp %77 : vector<8x8xf32>
    %cst_26 = arith.constant dense<0.000000e+00> : vector<8xf32>
    %79 = vector.multi_reduction <add>, %78, %cst_26 [1] : vector<8x8xf32> to vector<8xf32>
    %80 = vector.shape_cast %79 : vector<8xf32> to vector<8x1xf32>
    %81 = tpu.reciprocal %80 {approx = true} : vector<8x1xf32> -> vector<8x1xf32>
    %82 = vector.broadcast %81 : vector<8x1xf32> to vector<8x8xf32>
    %83 = arith.mulf %78, %82 : vector<8x8xf32>
    %84 = arith.truncf %83 : vector<8x8xf32> to vector<8x8xbf16>
    %cst_27 = arith.constant dense<0.000000e+00> : vector<8x8xf32>
    %85 = tpu.matmul %84, %69, %cst_27 {dimension_numbers = #tpu.dot_dimension_numbers<[1], [0], [0], [1], [0, 0, 1, 1], [], []>} : vector<8x8xbf16>, vector<8x8xbf16>, vector<8x8xf32> -> vector<8x8xf32>
    %86 = vector.extract_strided_slice %12 {offsets = [0, 24], sizes = [8, 8], strides = [1, 1]} : vector<16x32xf32> to vector<8x8xf32>
    %87 = arith.truncf %86 : vector<8x8xf32> to vector<8x8xbf16>
    %88 = vector.extract_strided_slice %13 {offsets = [0, 24], sizes = [8, 8], strides = [1, 1]} : vector<16x32xf32> to vector<8x8xf32>
    %89 = arith.truncf %88 : vector<8x8xf32> to vector<8x8xbf16>
    %90 = vector.extract_strided_slice %14 {offsets = [0, 24], sizes = [8, 8], strides = [1, 1]} : vector<16x32xf32> to vector<8x8xf32>
    %91 = arith.truncf %90 : vector<8x8xf32> to vector<8x8xbf16>
    %cst_28 = arith.constant dense<0.000000e+00> : vector<8x8xf32>
    %92 = tpu.matmul %87, %89, %cst_28 {dimension_numbers = #tpu.dot_dimension_numbers<[1], [1], [0], [0], [0, 0, 1, 0], [], []>} : vector<8x8xbf16>, vector<8x8xbf16>, vector<8x8xf32> -> vector<8x8xf32>
    %cst_29 = arith.constant 0.353553385 : f32
    %93 = vector.broadcast %cst_29 : f32 to vector<8x8xf32>
    %94 = arith.mulf %92, %93 : vector<8x8xf32>
    %95 = arith.addf %94, %19 : vector<8x8xf32>
    %cst_30 = arith.constant dense<0xFF800000> : vector<8xf32>
    %96 = vector.multi_reduction <maximumf>, %95, %cst_30 [1] : vector<8x8xf32> to vector<8xf32>
    %97 = vector.shape_cast %96 : vector<8xf32> to vector<8x1xf32>
    %98 = vector.broadcast %97 : vector<8x1xf32> to vector<8x8xf32>
    %99 = arith.subf %95, %98 : vector<8x8xf32>
    %100 = math.exp %99 : vector<8x8xf32>
    %cst_31 = arith.constant dense<0.000000e+00> : vector<8xf32>
    %101 = vector.multi_reduction <add>, %100, %cst_31 [1] : vector<8x8xf32> to vector<8xf32>
    %102 = vector.shape_cast %101 : vector<8xf32> to vector<8x1xf32>
    %103 = tpu.reciprocal %102 {approx = true} : vector<8x1xf32> -> vector<8x1xf32>
    %104 = vector.broadcast %103 : vector<8x1xf32> to vector<8x8xf32>
    %105 = arith.mulf %100, %104 : vector<8x8xf32>
    %106 = arith.truncf %105 : vector<8x8xf32> to vector<8x8xbf16>
    %cst_32 = arith.constant dense<0.000000e+00> : vector<8x8xf32>
    %107 = tpu.matmul %106, %91, %cst_32 {dimension_numbers = #tpu.dot_dimension_numbers<[1], [0], [0], [1], [0, 0, 1, 1], [], []>} : vector<8x8xbf16>, vector<8x8xbf16>, vector<8x8xf32> -> vector<8x8xf32>
    %108 = tpu.concatenate %41, %63, %85, %107 in 1 : vector<8x8xf32>, vector<8x8xf32>, vector<8x8xf32>, vector<8x8xf32> -> vector<8x32xf32>
    %109 = arith.truncf %108 : vector<8x32xf32> to vector<8x32xbf16>
    %cst_33 = arith.constant dense<0.000000e+00> : vector<8x32xf32>
    %110 = tpu.matmul %109, %16, %cst_33 {dimension_numbers = #tpu.dot_dimension_numbers<[1], [0], [0], [1], [0, 0, 1, 1], [], []>} : vector<8x32xbf16>, vector<32x32xbf16>, vector<8x32xf32> -> vector<8x32xf32>
    %c0_34 = arith.constant 0 : index
    %c0_35 = arith.constant 0 : index
    %111 = vector.load %arg19[%c0_34, %c0_35] : memref<16x32xf32, #tpu.memory_space<vmem>>, vector<8x32xf32>
    tpu.vector_store %arg19[%c0_34, %c0_35], %110 {strides = array<i32>} : memref<16x32xf32, #tpu.memory_space<vmem>>, vector<8x32xf32>,
    %c1 = arith.constant 1 : index
    %c0_36 = arith.constant 0 : index
    %112 = vector.load %arg2[%c1, %c0_36] : memref<2x8xf32, #tpu.memory_space<vmem>>, vector<1x8xf32>
    %113 = vector.shape_cast %112 : vector<1x8xf32> to vector<1x8xf32>
    %114 = vector.broadcast %113 : vector<1x8xf32> to vector<8x8xf32>
    %115 = vector.extract_strided_slice %12 {offsets = [8, 0], sizes = [8, 8], strides = [1, 1]} : vector<16x32xf32> to vector<8x8xf32>
    %116 = arith.truncf %115 : vector<8x8xf32> to vector<8x8xbf16>
    %117 = vector.extract_strided_slice %13 {offsets = [8, 0], sizes = [8, 8], strides = [1, 1]} : vector<16x32xf32> to vector<8x8xf32>
    %118 = arith.truncf %117 : vector<8x8xf32> to vector<8x8xbf16>
    %119 = vector.extract_strided_slice %14 {offsets = [8, 0], sizes = [8, 8], strides = [1, 1]} : vector<16x32xf32> to vector<8x8xf32>
    %120 = arith.truncf %119 : vector<8x8xf32> to vector<8x8xbf16>
    %cst_37 = arith.constant dense<0.000000e+00> : vector<8x8xf32>
    %121 = tpu.matmul %116, %118, %cst_37 {dimension_numbers = #tpu.dot_dimension_numbers<[1], [1], [0], [0], [0, 0, 1, 0], [], []>} : vector<8x8xbf16>, vector<8x8xbf16>, vector<8x8xf32> -> vector<8x8xf32>
    %cst_38 = arith.constant 0.353553385 : f32
    %122 = vector.broadcast %cst_38 : f32 to vector<8x8xf32>
    %123 = arith.mulf %121, %122 : vector<8x8xf32>
    %124 = arith.addf %123, %114 : vector<8x8xf32>
    %cst_39 = arith.constant dense<0xFF800000> : vector<8xf32>
    %125 = vector.multi_reduction <maximumf>, %124, %cst_39 [1] : vector<8x8xf32> to vector<8xf32>
    %126 = vector.shape_cast %125 : vector<8xf32> to vector<8x1xf32>
    %127 = vector.broadcast %126 : vector<8x1xf32> to vector<8x8xf32>
    %128 = arith.subf %124, %127 : vector<8x8xf32>
    %129 = math.exp %128 : vector<8x8xf32>
    %cst_40 = arith.constant dense<0.000000e+00> : vector<8xf32>
    %130 = vector.multi_reduction <add>, %129, %cst_40 [1] : vector<8x8xf32> to vector<8xf32>
    %131 = vector.shape_cast %130 : vector<8xf32> to vector<8x1xf32>
    %132 = tpu.reciprocal %131 {approx = true} : vector<8x1xf32> -> vector<8x1xf32>
    %133 = vector.broadcast %132 : vector<8x1xf32> to vector<8x8xf32>
    %134 = arith.mulf %129, %133 : vector<8x8xf32>
    %135 = arith.truncf %134 : vector<8x8xf32> to vector<8x8xbf16>
    %cst_41 = arith.constant dense<0.000000e+00> : vector<8x8xf32>
    %136 = tpu.matmul %135, %120, %cst_41 {dimension_numbers = #tpu.dot_dimension_numbers<[1], [0], [0], [1], [0, 0, 1, 1], [], []>} : vector<8x8xbf16>, vector<8x8xbf16>, vector<8x8xf32> -> vector<8x8xf32>
    %137 = vector.extract_strided_slice %12 {offsets = [8, 8], sizes = [8, 8], strides = [1, 1]} : vector<16x32xf32> to vector<8x8xf32>
    %138 = arith.truncf %137 : vector<8x8xf32> to vector<8x8xbf16>
    %139 = vector.extract_strided_slice %13 {offsets = [8, 8], sizes = [8, 8], strides = [1, 1]} : vector<16x32xf32> to vector<8x8xf32>
    %140 = arith.truncf %139 : vector<8x8xf32> to vector<8x8xbf16>
    %141 = vector.extract_strided_slice %14 {offsets = [8, 8], sizes = [8, 8], strides = [1, 1]} : vector<16x32xf32> to vector<8x8xf32>
    %142 = arith.truncf %141 : vector<8x8xf32> to vector<8x8xbf16>
    %cst_42 = arith.constant dense<0.000000e+00> : vector<8x8xf32>
    %143 = tpu.matmul %138, %140, %cst_42 {dimension_numbers = #tpu.dot_dimension_numbers<[1], [1], [0], [0], [0, 0, 1, 0], [], []>} : vector<8x8xbf16>, vector<8x8xbf16>, vector<8x8xf32> -> vector<8x8xf32>
    %cst_43 = arith.constant 0.353553385 : f32
    %144 = vector.broadcast %cst_43 : f32 to vector<8x8xf32>
    %145 = arith.mulf %143, %144 : vector<8x8xf32>
    %146 = arith.addf %145, %114 : vector<8x8xf32>
    %cst_44 = arith.constant dense<0xFF800000> : vector<8xf32>
    %147 = vector.multi_reduction <maximumf>, %146, %cst_44 [1] : vector<8x8xf32> to vector<8xf32>
    %148 = vector.shape_cast %147 : vector<8xf32> to vector<8x1xf32>
    %149 = vector.broadcast %148 : vector<8x1xf32> to vector<8x8xf32>
    %150 = arith.subf %146, %149 : vector<8x8xf32>
    %151 = math.exp %150 : vector<8x8xf32>
    %cst_45 = arith.constant dense<0.000000e+00> : vector<8xf32>
    %152 = vector.multi_reduction <add>, %151, %cst_45 [1] : vector<8x8xf32> to vector<8xf32>
    %153 = vector.shape_cast %152 : vector<8xf32> to vector<8x1xf32>
    %154 = tpu.reciprocal %153 {approx = true} : vector<8x1xf32> -> vector<8x1xf32>
    %155 = vector.broadcast %154 : vector<8x1xf32> to vector<8x8xf32>
    %156 = arith.mulf %151, %155 : vector<8x8xf32>
    %157 = arith.truncf %156 : vector<8x8xf32> to vector<8x8xbf16>
    %cst_46 = arith.constant dense<0.000000e+00> : vector<8x8xf32>
    %158 = tpu.matmul %157, %142, %cst_46 {dimension_numbers = #tpu.dot_dimension_numbers<[1], [0], [0], [1], [0, 0, 1, 1], [], []>} : vector<8x8xbf16>, vector<8x8xbf16>, vector<8x8xf32> -> vector<8x8xf32>
    %159 = vector.extract_strided_slice %12 {offsets = [8, 16], sizes = [8, 8], strides = [1, 1]} : vector<16x32xf32> to vector<8x8xf32>
    %160 = arith.truncf %159 : vector<8x8xf32> to vector<8x8xbf16>
    %161 = vector.extract_strided_slice %13 {offsets = [8, 16], sizes = [8, 8], strides = [1, 1]} : vector<16x32xf32> to vector<8x8xf32>
    %162 = arith.truncf %161 : vector<8x8xf32> to vector<8x8xbf16>
    %163 = vector.extract_strided_slice %14 {offsets = [8, 16], sizes = [8, 8], strides = [1, 1]} : vector<16x32xf32> to vector<8x8xf32>
    %164 = arith.truncf %163 : vector<8x8xf32> to vector<8x8xbf16>
    %cst_47 = arith.constant dense<0.000000e+00> : vector<8x8xf32>
    %165 = tpu.matmul %160, %162, %cst_47 {dimension_numbers = #tpu.dot_dimension_numbers<[1], [1], [0], [0], [0, 0, 1, 0], [], []>} : vector<8x8xbf16>, vector<8x8xbf16>, vector<8x8xf32> -> vector<8x8xf32>
    %cst_48 = arith.constant 0.353553385 : f32
    %166 = vector.broadcast %cst_48 : f32 to vector<8x8xf32>
    %167 = arith.mulf %165, %166 : vector<8x8xf32>
    %168 = arith.addf %167, %114 : vector<8x8xf32>
    %cst_49 = arith.constant dense<0xFF800000> : vector<8xf32>
    %169 = vector.multi_reduction <maximumf>, %168, %cst_49 [1] : vector<8x8xf32> to vector<8xf32>
    %170 = vector.shape_cast %169 : vector<8xf32> to vector<8x1xf32>
    %171 = vector.broadcast %170 : vector<8x1xf32> to vector<8x8xf32>
    %172 = arith.subf %168, %171 : vector<8x8xf32>
    %173 = math.exp %172 : vector<8x8xf32>
    %cst_50 = arith.constant dense<0.000000e+00> : vector<8xf32>
    %174 = vector.multi_reduction <add>, %173, %cst_50 [1] : vector<8x8xf32> to vector<8xf32>
    %175 = vector.shape_cast %174 : vector<8xf32> to vector<8x1xf32>
    %176 = tpu.reciprocal %175 {approx = true} : vector<8x1xf32> -> vector<8x1xf32>
    %177 = vector.broadcast %176 : vector<8x1xf32> to vector<8x8xf32>
    %178 = arith.mulf %173, %177 : vector<8x8xf32>
    %179 = arith.truncf %178 : vector<8x8xf32> to vector<8x8xbf16>
    %cst_51 = arith.constant dense<0.000000e+00> : vector<8x8xf32>
    %180 = tpu.matmul %179, %164, %cst_51 {dimension_numbers = #tpu.dot_dimension_numbers<[1], [0], [0], [1], [0, 0, 1, 1], [], []>} : vector<8x8xbf16>, vector<8x8xbf16>, vector<8x8xf32> -> vector<8x8xf32>
    %181 = vector.extract_strided_slice %12 {offsets = [8, 24], sizes = [8, 8], strides = [1, 1]} : vector<16x32xf32> to vector<8x8xf32>
    %182 = arith.truncf %181 : vector<8x8xf32> to vector<8x8xbf16>
    %183 = vector.extract_strided_slice %13 {offsets = [8, 24], sizes = [8, 8], strides = [1, 1]} : vector<16x32xf32> to vector<8x8xf32>
    %184 = arith.truncf %183 : vector<8x8xf32> to vector<8x8xbf16>
    %185 = vector.extract_strided_slice %14 {offsets = [8, 24], sizes = [8, 8], strides = [1, 1]} : vector<16x32xf32> to vector<8x8xf32>
    %186 = arith.truncf %185 : vector<8x8xf32> to vector<8x8xbf16>
    %cst_52 = arith.constant dense<0.000000e+00> : vector<8x8xf32>
    %187 = tpu.matmul %182, %184, %cst_52 {dimension_numbers = #tpu.dot_dimension_numbers<[1], [1], [0], [0], [0, 0, 1, 0], [], []>} : vector<8x8xbf16>, vector<8x8xbf16>, vector<8x8xf32> -> vector<8x8xf32>
    %cst_53 = arith.constant 0.353553385 : f32
    %188 = vector.broadcast %cst_53 : f32 to vector<8x8xf32>
    %189 = arith.mulf %187, %188 : vector<8x8xf32>
    %190 = arith.addf %189, %114 : vector<8x8xf32>
    %cst_54 = arith.constant dense<0xFF800000> : vector<8xf32>
    %191 = vector.multi_reduction <maximumf>, %190, %cst_54 [1] : vector<8x8xf32> to vector<8xf32>
    %192 = vector.shape_cast %191 : vector<8xf32> to vector<8x1xf32>
    %193 = vector.broadcast %192 : vector<8x1xf32> to vector<8x8xf32>
    %194 = arith.subf %190, %193 : vector<8x8xf32>
    %195 = math.exp %194 : vector<8x8xf32>
    %cst_55 = arith.constant dense<0.000000e+00> : vector<8xf32>
    %196 = vector.multi_reduction <add>, %195, %cst_55 [1] : vector<8x8xf32> to vector<8xf32>
    %197 = vector.shape_cast %196 : vector<8xf32> to vector<8x1xf32>
    %198 = tpu.reciprocal %197 {approx = true} : vector<8x1xf32> -> vector<8x1xf32>
    %199 = vector.broadcast %198 : vector<8x1xf32> to vector<8x8xf32>
    %200 = arith.mulf %195, %199 : vector<8x8xf32>
    %201 = arith.truncf %200 : vector<8x8xf32> to vector<8x8xbf16>
    %cst_56 = arith.constant dense<0.000000e+00> : vector<8x8xf32>
    %202 = tpu.matmul %201, %186, %cst_56 {dimension_numbers = #tpu.dot_dimension_numbers<[1], [0], [0], [1], [0, 0, 1, 1], [], []>} : vector<8x8xbf16>, vector<8x8xbf16>, vector<8x8xf32> -> vector<8x8xf32>
    %203 = tpu.concatenate %136, %158, %180, %202 in 1 : vector<8x8xf32>, vector<8x8xf32>, vector<8x8xf32>, vector<8x8xf32> -> vector<8x32xf32>
    %204 = arith.truncf %203 : vector<8x32xf32> to vector<8x32xbf16>
    %cst_57 = arith.constant dense<0.000000e+00> : vector<8x32xf32>
    %205 = tpu.matmul %204, %16, %cst_57 {dimension_numbers = #tpu.dot_dimension_numbers<[1], [0], [0], [1], [0, 0, 1, 1], [], []>} : vector<8x32xbf16>, vector<32x32xbf16>, vector<8x32xf32> -> vector<8x32xf32>
    %c8 = arith.constant 8 : index
    %c0_58 = arith.constant 0 : index
    %206 = vector.load %arg19[%c8, %c0_58] : memref<16x32xf32, #tpu.memory_space<vmem>>, vector<8x32xf32>
    tpu.vector_store %arg19[%c8, %c0_58], %205 {strides = array<i32>} : memref<16x32xf32, #tpu.memory_space<vmem>>, vector<8x32xf32>,
    %c0_59 = arith.constant 0 : index
    %c0_60 = arith.constant 0 : index
    %207 = vector.load %arg19[%c0_59, %c0_60] : memref<16x32xf32, #tpu.memory_space<vmem>>, vector<16x32xf32>
    %c0_61 = arith.constant 0 : index
    %c0_62 = arith.constant 0 : index
    %c0_63 = arith.constant 0 : index
    %208 = vector.load %arg8[%c0_61, %c0_62, %c0_63] : memref<1x1x32xf32, #tpu.memory_space<vmem>>, vector<1x1x32xf32>
    %209 = vector.shape_cast %208 : vector<1x1x32xf32> to vector<1x32xf32>
    %210 = vector.broadcast %209 : vector<1x32xf32> to vector<16x32xf32>
    %211 = arith.addf %207, %210 : vector<16x32xf32>
    %212 = arith.addf %211, %3 : vector<16x32xf32>
    %c0_64 = arith.constant 0 : index
    %c0_65 = arith.constant 0 : index
    %c0_66 = arith.constant 0 : index
    %213 = vector.load %arg9[%c0_64, %c0_65, %c0_66] : memref<1x1x32xf32, #tpu.memory_space<vmem>>, vector<1x1x32xf32>
    %214 = vector.shape_cast %213 : vector<1x1x32xf32> to vector<1x32xf32>
    %c0_67 = arith.constant 0 : index
    %c0_68 = arith.constant 0 : index
    %c0_69 = arith.constant 0 : index
    %215 = vector.load %arg10[%c0_67, %c0_68, %c0_69] : memref<1x1x32xf32, #tpu.memory_space<vmem>>, vector<1x1x32xf32>
    %216 = vector.shape_cast %215 : vector<1x1x32xf32> to vector<1x32xf32>
    %cst_70 = arith.constant dense<0.000000e+00> : vector<16xf32>
    %217 = vector.multi_reduction <add>, %212, %cst_70 [1] : vector<16x32xf32> to vector<16xf32>
    %218 = vector.shape_cast %217 : vector<16xf32> to vector<16x1xf32>
    %cst_71 = arith.constant 3.200000e+01 : f32
    %219 = vector.broadcast %cst_71 : f32 to vector<16x1xf32>
    %220 = arith.divf %218, %219 : vector<16x1xf32>
    %221 = vector.broadcast %220 : vector<16x1xf32> to vector<16x32xf32>
    %222 = arith.subf %212, %221 : vector<16x32xf32>
    %223 = arith.mulf %222, %222 : vector<16x32xf32>
    %cst_72 = arith.constant dense<0.000000e+00> : vector<16xf32>
    %224 = vector.multi_reduction <add>, %223, %cst_72 [1] : vector<16x32xf32> to vector<16xf32>
    %225 = vector.shape_cast %224 : vector<16xf32> to vector<16x1xf32>
    %cst_73 = arith.constant 3.200000e+01 : f32
    %226 = vector.broadcast %cst_73 : f32 to vector<16x1xf32>
    %227 = arith.divf %225, %226 : vector<16x1xf32>
    %228 = vector.broadcast %220 : vector<16x1xf32> to vector<16x32xf32>
    %229 = arith.subf %212, %228 : vector<16x32xf32>
    %cst_74 = arith.constant 9.99999996E-13 : f32
    %230 = vector.broadcast %cst_74 : f32 to vector<16x1xf32>
    %231 = arith.addf %227, %230 : vector<16x1xf32>
    %232 = math.rsqrt %231 : vector<16x1xf32>
    %233 = vector.broadcast %232 : vector<16x1xf32> to vector<16x32xf32>
    %234 = arith.mulf %229, %233 : vector<16x32xf32>
    %235 = vector.broadcast %214 : vector<1x32xf32> to vector<16x32xf32>
    %236 = arith.mulf %234, %235 : vector<16x32xf32>
    %237 = vector.broadcast %216 : vector<1x32xf32> to vector<16x32xf32>
    %238 = arith.addf %236, %237 : vector<16x32xf32>
    %239 = arith.truncf %238 : vector<16x32xf32> to vector<16x32xbf16>
    %c0_75 = arith.constant 0 : index
    %c0_76 = arith.constant 0 : index
    %c0_77 = arith.constant 0 : index
    %240 = vector.load %arg11[%c0_75, %c0_76, %c0_77] : memref<1x32x64xbf16, #tpu.memory_space<vmem>>, vector<1x32x64xbf16>
    %241 = vector.shape_cast %240 : vector<1x32x64xbf16> to vector<32x64xbf16>
    %cst_78 = arith.constant dense<0.000000e+00> : vector<16x64xf32>
    %242 = tpu.matmul %239, %241, %cst_78 {dimension_numbers = #tpu.dot_dimension_numbers<[1], [0], [0], [1], [0, 0, 1, 1], [], []>} : vector<16x32xbf16>, vector<32x64xbf16>, vector<16x64xf32> -> vector<16x64xf32>
    %c0_79 = arith.constant 0 : index
    %c0_80 = arith.constant 0 : index
    %c0_81 = arith.constant 0 : index
    %243 = vector.load %arg12[%c0_79, %c0_80, %c0_81] : memref<1x1x64xf32, #tpu.memory_space<vmem>>, vector<1x1x64xf32>
    %244 = vector.shape_cast %243 : vector<1x1x64xf32> to vector<1x64xf32>
    %245 = vector.broadcast %244 : vector<1x64xf32> to vector<16x64xf32>
    %246 = arith.addf %242, %245 : vector<16x64xf32>
    %cst_82 = arith.constant 5.000000e-01 : f32
    %247 = vector.broadcast %cst_82 : f32 to vector<16x64xf32>
    %248 = arith.mulf %247, %246 : vector<16x64xf32>
    %cst_83 = arith.constant 4.471500e-02 : f32
    %249 = vector.broadcast %cst_83 : f32 to vector<16x64xf32>
    %250 = arith.mulf %249, %246 : vector<16x64xf32>
    %251 = arith.mulf %250, %246 : vector<16x64xf32>
    %252 = arith.mulf %251, %246 : vector<16x64xf32>
    %253 = arith.addf %246, %252 : vector<16x64xf32>
    %cst_84 = arith.constant 0.797884583 : f32
    %254 = vector.broadcast %cst_84 : f32 to vector<16x64xf32>
    %255 = arith.mulf %254, %253 : vector<16x64xf32>
    %256 = math.tanh %255 : vector<16x64xf32>
    %cst_85 = arith.constant 1.000000e+00 : f32
    %257 = vector.broadcast %cst_85 : f32 to vector<16x64xf32>
    %258 = arith.addf %257, %256 : vector<16x64xf32>
    %259 = arith.mulf %248, %258 : vector<16x64xf32>
    %260 = arith.truncf %259 : vector<16x64xf32> to vector<16x64xbf16>
    %c0_86 = arith.constant 0 : index
    %c0_87 = arith.constant 0 : index
    %c0_88 = arith.constant 0 : index
    %261 = vector.load %arg13[%c0_86, %c0_87, %c0_88] : memref<1x64x32xbf16, #tpu.memory_space<vmem>>, vector<1x64x32xbf16>
    %262 = vector.shape_cast %261 : vector<1x64x32xbf16> to vector<64x32xbf16>
    %cst_89 = arith.constant dense<0.000000e+00> : vector<16x32xf32>
    %263 = tpu.matmul %260, %262, %cst_89 {dimension_numbers = #tpu.dot_dimension_numbers<[1], [0], [0], [1], [0, 0, 1, 1], [], []>} : vector<16x64xbf16>, vector<64x32xbf16>, vector<16x32xf32> -> vector<16x32xf32>
    %c0_90 = arith.constant 0 : index
    %c0_91 = arith.constant 0 : index
    %c0_92 = arith.constant 0 : index
    %264 = vector.load %arg14[%c0_90, %c0_91, %c0_92] : memref<1x1x32xf32, #tpu.memory_space<vmem>>, vector<1x1x32xf32>
    %265 = vector.shape_cast %264 : vector<1x1x32xf32> to vector<1x32xf32>
    %266 = vector.broadcast %265 : vector<1x32xf32> to vector<16x32xf32>
    %267 = arith.addf %263, %266 : vector<16x32xf32>
    %268 = arith.addf %267, %238 : vector<16x32xf32>
    %c0_93 = arith.constant 0 : index
    %c0_94 = arith.constant 0 : index
    %c0_95 = arith.constant 0 : index
    %269 = vector.load %arg15[%c0_93, %c0_94, %c0_95] : memref<1x1x32xf32, #tpu.memory_space<vmem>>, vector<1x1x32xf32>
    %270 = vector.shape_cast %269 : vector<1x1x32xf32> to vector<1x32xf32>
    %c0_96 = arith.constant 0 : index
    %c0_97 = arith.constant 0 : index
    %c0_98 = arith.constant 0 : index
    %271 = vector.load %arg16[%c0_96, %c0_97, %c0_98] : memref<1x1x32xf32, #tpu.memory_space<vmem>>, vector<1x1x32xf32>
    %272 = vector.shape_cast %271 : vector<1x1x32xf32> to vector<1x32xf32>
    %cst_99 = arith.constant dense<0.000000e+00> : vector<16xf32>
    %273 = vector.multi_reduction <add>, %268, %cst_99 [1] : vector<16x32xf32> to vector<16xf32>
    %274 = vector.shape_cast %273 : vector<16xf32> to vector<16x1xf32>
    %cst_100 = arith.constant 3.200000e+01 : f32
    %275 = vector.broadcast %cst_100 : f32 to vector<16x1xf32>
    %276 = arith.divf %274, %275 : vector<16x1xf32>
    %277 = vector.broadcast %276 : vector<16x1xf32> to vector<16x32xf32>
    %278 = arith.subf %268, %277 : vector<16x32xf32>
    %279 = arith.mulf %278, %278 : vector<16x32xf32>
    %cst_101 = arith.constant dense<0.000000e+00> : vector<16xf32>
    %280 = vector.multi_reduction <add>, %279, %cst_101 [1] : vector<16x32xf32> to vector<16xf32>
    %281 = vector.shape_cast %280 : vector<16xf32> to vector<16x1xf32>
    %cst_102 = arith.constant 3.200000e+01 : f32
    %282 = vector.broadcast %cst_102 : f32 to vector<16x1xf32>
    %283 = arith.divf %281, %282 : vector<16x1xf32>
    %284 = vector.broadcast %276 : vector<16x1xf32> to vector<16x32xf32>
    %285 = arith.subf %268, %284 : vector<16x32xf32>
    %cst_103 = arith.constant 9.99999996E-13 : f32
    %286 = vector.broadcast %cst_103 : f32 to vector<16x1xf32>
    %287 = arith.addf %283, %286 : vector<16x1xf32>
    %288 = math.rsqrt %287 : vector<16x1xf32>
    %289 = vector.broadcast %288 : vector<16x1xf32> to vector<16x32xf32>
    %290 = arith.mulf %285, %289 : vector<16x32xf32>
    %291 = vector.broadcast %270 : vector<1x32xf32> to vector<16x32xf32>
    %292 = arith.mulf %290, %291 : vector<16x32xf32>
    %293 = vector.broadcast %272 : vector<1x32xf32> to vector<16x32xf32>
    %294 = arith.addf %292, %293 : vector<16x32xf32>
    %c0_104 = arith.constant 0 : index
    %c0_105 = arith.constant 0 : index
    %295 = vector.load %arg18[%c0_104, %c0_105] : memref<16x32xf32, #tpu.memory_space<vmem>>, vector<16x32xf32>
    tpu.vector_store %arg18[%c0_104, %c0_105], %294 {strides = array<i32>} : memref<16x32xf32, #tpu.memory_space<vmem>>, vector<16x32xf32>,
    %c0_106 = arith.constant 0 : index
    %c0_107 = arith.constant 0 : index
    %296 = vector.load %arg17[%c0_106, %c0_107] : memref<16x32xf32, #tpu.memory_space<vmem>>, vector<16x32xf32>
    tpu.vector_store %arg17[%c0_106, %c0_107], %294 {strides = array<i32>} : memref<16x32xf32, #tpu.memory_space<vmem>>, vector<16x32xf32>,
    return
  }
  func.func @transform_0(%arg0: i32) -> (i32, i32) {
    %c0_i32 = arith.constant 0 : i32
    %c0_i32_0 = arith.constant 0 : i32
    %c0_i32_1 = arith.constant 0 : i32
    return %c0_i32, %c0_i32_0 : i32, i32
  }
  func.func @transform_1(%arg0: i32) -> (i32, i32) {
    %c0_i32 = arith.constant 0 : i32
    %c0_i32_0 = arith.constant 0 : i32
    %c0_i32_1 = arith.constant 0 : i32
    return %c0_i32, %c0_i32_0 : i32, i32
  }
  func.func @transform_2(%arg0: i32) -> (i32, i32) {
    %c0_i32 = arith.constant 0 : i32
    %c0_i32_0 = arith.constant 0 : i32
    %c0_i32_1 = arith.constant 0 : i32
    return %c0_i32, %c0_i32_0 : i32, i32
  }
  func.func @transform_3(%arg0: i32) -> (i32, i32) {
    %c0_i32 = arith.constant 0 : i32
    %c0_i32_0 = arith.constant 0 : i32
    %c0_i32_1 = arith.constant 0 : i32
    return %c0_i32, %c0_i32_0 : i32, i32
  }
  func.func @transform_4(%arg0: i32) -> (i32, i32, i32) {
    %c0_i32 = arith.constant 0 : i32
    %c0_i32_0 = arith.constant 0 : i32
    %c0_i32_1 = arith.constant 0 : i32
    return %arg0, %c0_i32, %c0_i32_0 : i32, i32, i32
  }
  func.func @transform_5(%arg0: i32) -> (i32, i32, i32) {
    %c0_i32 = arith.constant 0 : i32
    %c0_i32_0 = arith.constant 0 : i32
    %c0_i32_1 = arith.constant 0 : i32
    return %arg0, %c0_i32, %c0_i32_0 : i32, i32, i32
  }
  func.func @transform_6(%arg0: i32) -> (i32, i32, i32) {
    %c0_i32 = arith.constant 0 : i32
    %c0_i32_0 = arith.constant 0 : i32
    %c0_i32_1 = arith.constant 0 : i32
    return %arg0, %c0_i32, %c0_i32_0 : i32, i32, i32
  }
  func.func @transform_7(%arg0: i32) -> (i32, i32, i32) {
    %c0_i32 = arith.constant 0 : i32
    %c0_i32_0 = arith.constant 0 : i32
    %c0_i32_1 = arith.constant 0 : i32
    return %arg0, %c0_i32, %c0_i32_0 : i32, i32, i32
  }
  func.func @transform_8(%arg0: i32) -> (i32, i32, i32) {
    %c0_i32 = arith.constant 0 : i32
    %c0_i32_0 = arith.constant 0 : i32
    %c0_i32_1 = arith.constant 0 : i32
    return %arg0, %c0_i32, %c0_i32_0 : i32, i32, i32
  }
  func.func @transform_9(%arg0: i32) -> (i32, i32, i32) {
    %c0_i32 = arith.constant 0 : i32
    %c0_i32_0 = arith.constant 0 : i32
    %c0_i32_1 = arith.constant 0 : i32
    return %arg0, %c0_i32, %c0_i32_0 : i32, i32, i32
  }
  func.func @transform_10(%arg0: i32) -> (i32, i32, i32) {
    %c0_i32 = arith.constant 0 : i32
    %c0_i32_0 = arith.constant 0 : i32
    %c0_i32_1 = arith.constant 0 : i32
    return %arg0, %c0_i32, %c0_i32_0 : i32, i32, i32
  }
  func.func @transform_11(%arg0: i32) -> (i32, i32, i32) {
    %c0_i32 = arith.constant 0 : i32
    %c0_i32_0 = arith.constant 0 : i32
    %c0_i32_1 = arith.constant 0 : i32
    return %arg0, %c0_i32, %c0_i32_0 : i32, i32, i32
  }
  func.func @transform_12(%arg0: i32) -> (i32, i32, i32) {
    %c0_i32 = arith.constant 0 : i32
    %c0_i32_0 = arith.constant 0 : i32
    %c0_i32_1 = arith.constant 0 : i32
    return %arg0, %c0_i32, %c0_i32_0 : i32, i32, i32
  }
  func.func @transform_13(%arg0: i32) -> (i32, i32, i32) {
    %c0_i32 = arith.constant 0 : i32
    %c0_i32_0 = arith.constant 0 : i32
    %c0_i32_1 = arith.constant 0 : i32
    return %arg0, %c0_i32, %c0_i32_0 : i32, i32, i32
  }
  func.func @transform_14(%arg0: i32) -> (i32, i32, i32) {
    %c0_i32 = arith.constant 0 : i32
    %c0_i32_0 = arith.constant 0 : i32
    %c0_i32_1 = arith.constant 0 : i32
    return %arg0, %c0_i32, %c0_i32_0 : i32, i32, i32
  }
  func.func @transform_15(%arg0: i32) -> (i32, i32, i32) {
    %c0_i32 = arith.constant 0 : i32
    %c0_i32_0 = arith.constant 0 : i32
    %c0_i32_1 = arith.constant 0 : i32
    return %arg0, %c0_i32, %c0_i32_0 : i32, i32, i32
  }
  func.func @transform_16(%arg0: i32) -> (i32, i32) {
    %c0_i32 = arith.constant 0 : i32
    %c0_i32_0 = arith.constant 0 : i32
    %c0_i32_1 = arith.constant 0 : i32
    return %c0_i32, %c0_i32_0 : i32, i32
  }
}

</mosaic_0001>

<llo_original>
// kernel: simple_bert_forward.1
$region0: #{simple_bert_forward.1}
  #allocation0 [shape = 'u32[]', space=smem, size = 0x4, offset = 0x4, fixed_abs, tag = 'smem constant byte address 0x4 - core index']
  #allocation1 [shape = 'u32[144,128]{1,0:T(1,128)}', space=vmem, size = 0x12000, scoped, tag = 'internal scratch']
  #allocation2 [shape = 'f32[16,32]{1,0:T(8,128)}', space=vmem, size = 0x2000, scoped, tag = 'scratch operand']
  #allocation3 [shape = 'f32[16,32]{1,0:T(8,128)}', space=vmem, size = 0x2000, scoped, tag = 'scratch operand']
  %s0 = inlined_call_operand.vmem [shape: f32[16,32], index: 0, kind: input, shape index: {}]
  %s1 = inlined_call_operand.vmem [shape: f32[2,8], index: 1, kind: input, shape index: {}]
  %s2 = inlined_call_operand.vmem [shape: f32[1,32], index: 2, kind: input, shape index: {}]
  %s3 = inlined_call_operand.vmem [shape: f32[1,32], index: 3, kind: input, shape index: {}]
  %s4 = inlined_call_operand.vmem [shape: bf16[2,32,96], index: 4, kind: input, shape index: {}]
  %s5 = inlined_call_operand.vmem [shape: f32[2,1,96], index: 5, kind: input, shape index: {}]
  %s6 = inlined_call_operand.vmem [shape: bf16[2,32,32], index: 6, kind: input, shape index: {}]
  %s7 = inlined_call_operand.vmem [shape: f32[2,1,32], index: 7, kind: input, shape index: {}]
  %s8 = inlined_call_operand.vmem [shape: f32[2,1,32], index: 8, kind: input, shape index: {}]
  %s9 = inlined_call_operand.vmem [shape: f32[2,1,32], index: 9, kind: input, shape index: {}]
  %s10 = inlined_call_operand.vmem [shape: bf16[2,32,64], index: 10, kind: input, shape index: {}]
  %s11 = inlined_call_operand.vmem [shape: f32[2,1,64], index: 11, kind: input, shape index: {}]
  %s12 = inlined_call_operand.vmem [shape: bf16[2,64,32], index: 12, kind: input, shape index: {}]
  %s13 = inlined_call_operand.vmem [shape: f32[2,1,32], index: 13, kind: input, shape index: {}]
  %s14 = inlined_call_operand.vmem [shape: f32[2,1,32], index: 14, kind: input, shape index: {}]
  %s15 = inlined_call_operand.vmem [shape: f32[2,1,32], index: 15, kind: input, shape index: {}]
  %s16 = inlined_call_operand.vmem [shape: f32[16,32], index: 16, kind: output, shape index: {}]
  %s17 = sld [smem:[#allocation0]]
  $region101: #{simple_bert_forward.1} parent=0
    _
  %s19 = ssub.s32 1, %s17
  %s20 = scalar_select 0, %s19, %s17
  loop: start=0, step=1, limit=4
  $region2: #{simple_bert_forward.1} parent=0 // loop_pre_header
    _
  $region3: #{simple_bert_forward.1} parent=0 // loop_header
    %s22 = sphi 0, %s26
    %p23 = scmp.ge.s32.totalorder %s22, 4
    %s30 = sphi 0, %s30
    %s32 = sphi 0, %s30
    %s33 = sphi 0, %s32
    %s47 = sphi 0, %s33
    %s51 = sphi 0, %s51
    %s53 = sphi 0, %s51
    %s54 = sphi 0, %s53
    %s68 = sphi 0, %s54
    %s72 = sphi 0, %s72
    %s74 = sphi 0, %s72
    %s75 = sphi 0, %s74
    %s89 = sphi 0, %s75
    %s93 = sphi 0, %s93
    %s95 = sphi 0, %s93
    %s96 = sphi 0, %s95
    %s110 = sphi 0, %s96
    %s116 = sphi 0, %s118
    %s119 = sphi 0, %s116
    %s120 = sphi 0, %s119
    %s136 = sphi 0, %s120
    %s142 = sphi 0, %s144
    %s145 = sphi 0, %s142
    %s146 = sphi 0, %s145
    %s162 = sphi 0, %s146
    %s168 = sphi 0, %s170
    %s171 = sphi 0, %s168
    %s172 = sphi 0, %s171
    %s188 = sphi 0, %s172
    %s194 = sphi 0, %s196
    %s197 = sphi 0, %s194
    %s198 = sphi 0, %s197
    %s214 = sphi 0, %s198
    %s220 = sphi 0, %s222
    %s223 = sphi 0, %s220
    %s224 = sphi 0, %s223
    %s240 = sphi 0, %s224
    %s246 = sphi 0, %s248
    %s249 = sphi 0, %s246
    %s250 = sphi 0, %s249
    %s266 = sphi 0, %s250
    %s272 = sphi 0, %s274
    %s275 = sphi 0, %s272
    %s276 = sphi 0, %s275
    %s292 = sphi 0, %s276
    %s298 = sphi 0, %s300
    %s301 = sphi 0, %s298
    %s302 = sphi 0, %s301
    %s318 = sphi 0, %s302
    %s324 = sphi 0, %s326
    %s327 = sphi 0, %s324
    %s328 = sphi 0, %s327
    %s344 = sphi 0, %s328
    %s350 = sphi 0, %s352
    %s353 = sphi 0, %s350
    %s354 = sphi 0, %s353
    %s370 = sphi 0, %s354
    %s376 = sphi 0, %s378
    %s379 = sphi 0, %s376
    %s380 = sphi 0, %s379
    %s396 = sphi 0, %s380
    %s402 = sphi 0, %s404
    %s405 = sphi 0, %s402
    %s406 = sphi 0, %s405
    %s422 = sphi 0, %s406
    %s426 = sphi 0, %s426
    %s428 = sphi 0, %s426
    %s429 = sphi 0, %s428
    %s443 = sphi 0, %s429
  $region4: #{simple_bert_forward.1} parent=0 // loop_header_branch
    %25 = sbr.rel (%p23) target = $region8
  $region5: #{simple_bert_forward.1} parent=0 // loop_body
    %s27 = ssub.s32 %s22, 1
    %s28 = ssub.s32 %s22, 2
    %s29 = sadd.s32 %s22, 1
    %s31 = sadd.s32 %s30, 1
    %p34 = scmp.eq.s32.totalorder %s22, 1
    %p35 = scmp.ne.s32.totalorder %s30, %s32
    %p36 = scmp.eq.s32.totalorder %s22, 0
    %p37 = por %p35, %p36
    %p38 = scmp.ne.s32.totalorder %s30, %s32
    %p39 = scmp.eq.s32.totalorder %s27, 1
    %p40 = por %p38, %p39
    %p41 = scmp.ne.s32.totalorder %s32, %s33
    %p42 = scmp.eq.s32.totalorder %s27, 0
    %p43 = por %p41, %p42
    %p44 = scmp.ne.s32.totalorder %s32, %s33
    %p45 = scmp.eq.s32.totalorder %s28, 1
    %p46 = por %p44, %p45
    %p48 = scmp.ne.s32.totalorder %s33, %s47
    %p49 = scmp.eq.s32.totalorder %s28, 0
    %p50 = por %p48, %p49
    %s52 = sadd.s32 %s51, 1
    %p55 = scmp.eq.s32.totalorder %s22, 1
    %p56 = scmp.ne.s32.totalorder %s51, %s53
    %p57 = scmp.eq.s32.totalorder %s22, 0
    %p58 = por %p56, %p57
    %p59 = scmp.ne.s32.totalorder %s51, %s53
    %p60 = scmp.eq.s32.totalorder %s27, 1
    %p61 = por %p59, %p60
    %p62 = scmp.ne.s32.totalorder %s53, %s54
    %p63 = scmp.eq.s32.totalorder %s27, 0
    %p64 = por %p62, %p63
    %p65 = scmp.ne.s32.totalorder %s53, %s54
    %p66 = scmp.eq.s32.totalorder %s28, 1
    %p67 = por %p65, %p66
    %p69 = scmp.ne.s32.totalorder %s54, %s68
    %p70 = scmp.eq.s32.totalorder %s28, 0
    %p71 = por %p69, %p70
    %s73 = sadd.s32 %s72, 1
    %p76 = scmp.eq.s32.totalorder %s22, 1
    %p77 = scmp.ne.s32.totalorder %s72, %s74
    %p78 = scmp.eq.s32.totalorder %s22, 0
    %p79 = por %p77, %p78
    %p80 = scmp.ne.s32.totalorder %s72, %s74
    %p81 = scmp.eq.s32.totalorder %s27, 1
    %p82 = por %p80, %p81
    %p83 = scmp.ne.s32.totalorder %s74, %s75
    %p84 = scmp.eq.s32.totalorder %s27, 0
    %p85 = por %p83, %p84
    %p86 = scmp.ne.s32.totalorder %s74, %s75
    %p87 = scmp.eq.s32.totalorder %s28, 1
    %p88 = por %p86, %p87
    %p90 = scmp.ne.s32.totalorder %s75, %s89
    %p91 = scmp.eq.s32.totalorder %s28, 0
    %p92 = por %p90, %p91
    %s94 = sadd.s32 %s93, 1
    %p97 = scmp.eq.s32.totalorder %s22, 1
    %p98 = scmp.ne.s32.totalorder %s93, %s95
    %p99 = scmp.eq.s32.totalorder %s22, 0
    %p100 = por %p98, %p99
    %p101 = scmp.ne.s32.totalorder %s93, %s95
    %p102 = scmp.eq.s32.totalorder %s27, 1
    %p103 = por %p101, %p102
    %p104 = scmp.ne.s32.totalorder %s95, %s96
    %p105 = scmp.eq.s32.totalorder %s27, 0
    %p106 = por %p104, %p105
    %p107 = scmp.ne.s32.totalorder %s95, %s96
    %p108 = scmp.eq.s32.totalorder %s28, 1
    %p109 = por %p107, %p108
    %p111 = scmp.ne.s32.totalorder %s96, %s110
    %p112 = scmp.eq.s32.totalorder %s28, 0
    %p113 = por %p111, %p112
    %s114 = ssub.s32 %s22, %s29
    %p115 = scmp.eq.s32.totalorder %s114, 0
    %s117 = sadd.s32 %s116, 1
    %s118 = scalar_select %p115, %s116, %s117
    %p121 = pneg %p115
    %p122 = scmp.eq.s32.totalorder %s22, 1
    %p123 = por %p121, %p122
    %p124 = scmp.ne.s32.totalorder %s116, %s119
    %p125 = scmp.eq.s32.totalorder %s22, 0
    %p126 = por %p124, %p125
    %p127 = scmp.ne.s32.totalorder %s116, %s119
    %p128 = scmp.eq.s32.totalorder %s27, 1
    %p129 = por %p127, %p128
    %p130 = scmp.ne.s32.totalorder %s119, %s120
    %p131 = scmp.eq.s32.totalorder %s27, 0
    %p132 = por %p130, %p131
    %p133 = scmp.ne.s32.totalorder %s119, %s120
    %p134 = scmp.eq.s32.totalorder %s28, 1
    %p135 = por %p133, %p134
    %p137 = scmp.ne.s32.totalorder %s120, %s136
    %p138 = scmp.eq.s32.totalorder %s28, 0
    %p139 = por %p137, %p138
    %s140 = ssub.s32 %s22, %s29
    %p141 = scmp.eq.s32.totalorder %s140, 0
    %s143 = sadd.s32 %s142, 1
    %s144 = scalar_select %p141, %s142, %s143
    %p147 = pneg %p141
    %p148 = scmp.eq.s32.totalorder %s22, 1
    %p149 = por %p147, %p148
    %p150 = scmp.ne.s32.totalorder %s142, %s145
    %p151 = scmp.eq.s32.totalorder %s22, 0
    %p152 = por %p150, %p151
    %p153 = scmp.ne.s32.totalorder %s142, %s145
    %p154 = scmp.eq.s32.totalorder %s27, 1
    %p155 = por %p153, %p154
    %p156 = scmp.ne.s32.totalorder %s145, %s146
    %p157 = scmp.eq.s32.totalorder %s27, 0
    %p158 = por %p156, %p157
    %p159 = scmp.ne.s32.totalorder %s145, %s146
    %p160 = scmp.eq.s32.totalorder %s28, 1
    %p161 = por %p159, %p160
    %p163 = scmp.ne.s32.totalorder %s146, %s162
    %p164 = scmp.eq.s32.totalorder %s28, 0
    %p165 = por %p163, %p164
    %s166 = ssub.s32 %s22, %s29
    %p167 = scmp.eq.s32.totalorder %s166, 0
    %s169 = sadd.s32 %s168, 1
    %s170 = scalar_select %p167, %s168, %s169
    %p173 = pneg %p167
    %p174 = scmp.eq.s32.totalorder %s22, 1
    %p175 = por %p173, %p174
    %p176 = scmp.ne.s32.totalorder %s168, %s171
    %p177 = scmp.eq.s32.totalorder %s22, 0
    %p178 = por %p176, %p177
    %p179 = scmp.ne.s32.totalorder %s168, %s171
    %p180 = scmp.eq.s32.totalorder %s27, 1
    %p181 = por %p179, %p180
    %p182 = scmp.ne.s32.totalorder %s171, %s172
    %p183 = scmp.eq.s32.totalorder %s27, 0
    %p184 = por %p182, %p183
    %p185 = scmp.ne.s32.totalorder %s171, %s172
    %p186 = scmp.eq.s32.totalorder %s28, 1
    %p187 = por %p185, %p186
    %p189 = scmp.ne.s32.totalorder %s172, %s188
    %p190 = scmp.eq.s32.totalorder %s28, 0
    %p191 = por %p189, %p190
    %s192 = ssub.s32 %s22, %s29
    %p193 = scmp.eq.s32.totalorder %s192, 0
    %s195 = sadd.s32 %s194, 1
    %s196 = scalar_select %p193, %s194, %s195
    %p199 = pneg %p193
    %p200 = scmp.eq.s32.totalorder %s22, 1
    %p201 = por %p199, %p200
    %p202 = scmp.ne.s32.totalorder %s194, %s197
    %p203 = scmp.eq.s32.totalorder %s22, 0
    %p204 = por %p202, %p203
    %p205 = scmp.ne.s32.totalorder %s194, %s197
    %p206 = scmp.eq.s32.totalorder %s27, 1
    %p207 = por %p205, %p206
    %p208 = scmp.ne.s32.totalorder %s197, %s198
    %p209 = scmp.eq.s32.totalorder %s27, 0
    %p210 = por %p208, %p209
    %p211 = scmp.ne.s32.totalorder %s197, %s198
    %p212 = scmp.eq.s32.totalorder %s28, 1
    %p213 = por %p211, %p212
    %p215 = scmp.ne.s32.totalorder %s198, %s214
    %p216 = scmp.eq.s32.totalorder %s28, 0
    %p217 = por %p215, %p216
    %s218 = ssub.s32 %s22, %s29
    %p219 = scmp.eq.s32.totalorder %s218, 0
    %s221 = sadd.s32 %s220, 1
    %s222 = scalar_select %p219, %s220, %s221
    %p225 = pneg %p219
    %p226 = scmp.eq.s32.totalorder %s22, 1
    %p227 = por %p225, %p226
    %p228 = scmp.ne.s32.totalorder %s220, %s223
    %p229 = scmp.eq.s32.totalorder %s22, 0
    %p230 = por %p228, %p229
    %p231 = scmp.ne.s32.totalorder %s220, %s223
    %p232 = scmp.eq.s32.totalorder %s27, 1
    %p233 = por %p231, %p232
    %p234 = scmp.ne.s32.totalorder %s223, %s224
    %p235 = scmp.eq.s32.totalorder %s27, 0
    %p236 = por %p234, %p235
    %p237 = scmp.ne.s32.totalorder %s223, %s224
    %p238 = scmp.eq.s32.totalorder %s28, 1
    %p239 = por %p237, %p238
    %p241 = scmp.ne.s32.totalorder %s224, %s240
    %p242 = scmp.eq.s32.totalorder %s28, 0
    %p243 = por %p241, %p242
    %s244 = ssub.s32 %s22, %s29
    %p245 = scmp.eq.s32.totalorder %s244, 0
    %s247 = sadd.s32 %s246, 1
    %s248 = scalar_select %p245, %s246, %s247
    %p251 = pneg %p245
    %p252 = scmp.eq.s32.totalorder %s22, 1
    %p253 = por %p251, %p252
    %p254 = scmp.ne.s32.totalorder %s246, %s249
    %p255 = scmp.eq.s32.totalorder %s22, 0
    %p256 = por %p254, %p255
    %p257 = scmp.ne.s32.totalorder %s246, %s249
    %p258 = scmp.eq.s32.totalorder %s27, 1
    %p259 = por %p257, %p258
    %p260 = scmp.ne.s32.totalorder %s249, %s250
    %p261 = scmp.eq.s32.totalorder %s27, 0
    %p262 = por %p260, %p261
    %p263 = scmp.ne.s32.totalorder %s249, %s250
    %p264 = scmp.eq.s32.totalorder %s28, 1
    %p265 = por %p263, %p264
    %p267 = scmp.ne.s32.totalorder %s250, %s266
    %p268 = scmp.eq.s32.totalorder %s28, 0
    %p269 = por %p267, %p268
    %s270 = ssub.s32 %s22, %s29
    %p271 = scmp.eq.s32.totalorder %s270, 0
    %s273 = sadd.s32 %s272, 1
    %s274 = scalar_select %p271, %s272, %s273
    %p277 = pneg %p271
    %p278 = scmp.eq.s32.totalorder %s22, 1
    %p279 = por %p277, %p278
    %p280 = scmp.ne.s32.totalorder %s272, %s275
    %p281 = scmp.eq.s32.totalorder %s22, 0
    %p282 = por %p280, %p281
    %p283 = scmp.ne.s32.totalorder %s272, %s275
    %p284 = scmp.eq.s32.totalorder %s27, 1
    %p285 = por %p283, %p284
    %p286 = scmp.ne.s32.totalorder %s275, %s276
    %p287 = scmp.eq.s32.totalorder %s27, 0
    %p288 = por %p286, %p287
    %p289 = scmp.ne.s32.totalorder %s275, %s276
    %p290 = scmp.eq.s32.totalorder %s28, 1
    %p291 = por %p289, %p290
    %p293 = scmp.ne.s32.totalorder %s276, %s292
    %p294 = scmp.eq.s32.totalorder %s28, 0
    %p295 = por %p293, %p294
    %s296 = ssub.s32 %s22, %s29
    %p297 = scmp.eq.s32.totalorder %s296, 0
    %s299 = sadd.s32 %s298, 1
    %s300 = scalar_select %p297, %s298, %s299
    %p303 = pneg %p297
    %p304 = scmp.eq.s32.totalorder %s22, 1
    %p305 = por %p303, %p304
    %p306 = scmp.ne.s32.totalorder %s298, %s301
    %p307 = scmp.eq.s32.totalorder %s22, 0
    %p308 = por %p306, %p307
    %p309 = scmp.ne.s32.totalorder %s298, %s301
    %p310 = scmp.eq.s32.totalorder %s27, 1
    %p311 = por %p309, %p310
    %p312 = scmp.ne.s32.totalorder %s301, %s302
    %p313 = scmp.eq.s32.totalorder %s27, 0
    %p314 = por %p312, %p313
    %p315 = scmp.ne.s32.totalorder %s301, %s302
    %p316 = scmp.eq.s32.totalorder %s28, 1
    %p317 = por %p315, %p316
    %p319 = scmp.ne.s32.totalorder %s302, %s318
    %p320 = scmp.eq.s32.totalorder %s28, 0
    %p321 = por %p319, %p320
    %s322 = ssub.s32 %s22, %s29
    %p323 = scmp.eq.s32.totalorder %s322, 0
    %s325 = sadd.s32 %s324, 1
    %s326 = scalar_select %p323, %s324, %s325
    %p329 = pneg %p323
    %p330 = scmp.eq.s32.totalorder %s22, 1
    %p331 = por %p329, %p330
    %p332 = scmp.ne.s32.totalorder %s324, %s327
    %p333 = scmp.eq.s32.totalorder %s22, 0
    %p334 = por %p332, %p333
    %p335 = scmp.ne.s32.totalorder %s324, %s327
    %p336 = scmp.eq.s32.totalorder %s27, 1
    %p337 = por %p335, %p336
    %p338 = scmp.ne.s32.totalorder %s327, %s328
    %p339 = scmp.eq.s32.totalorder %s27, 0
    %p340 = por %p338, %p339
    %p341 = scmp.ne.s32.totalorder %s327, %s328
    %p342 = scmp.eq.s32.totalorder %s28, 1
    %p343 = por %p341, %p342
    %p345 = scmp.ne.s32.totalorder %s328, %s344
    %p346 = scmp.eq.s32.totalorder %s28, 0
    %p347 = por %p345, %p346
    %s348 = ssub.s32 %s22, %s29
    %p349 = scmp.eq.s32.totalorder %s348, 0
    %s351 = sadd.s32 %s350, 1
    %s352 = scalar_select %p349, %s350, %s351
    %p355 = pneg %p349
    %p356 = scmp.eq.s32.totalorder %s22, 1
    %p357 = por %p355, %p356
    %p358 = scmp.ne.s32.totalorder %s350, %s353
    %p359 = scmp.eq.s32.totalorder %s22, 0
    %p360 = por %p358, %p359
    %p361 = scmp.ne.s32.totalorder %s350, %s353
    %p362 = scmp.eq.s32.totalorder %s27, 1
    %p363 = por %p361, %p362
    %p364 = scmp.ne.s32.totalorder %s353, %s354
    %p365 = scmp.eq.s32.totalorder %s27, 0
    %p366 = por %p364, %p365
    %p367 = scmp.ne.s32.totalorder %s353, %s354
    %p368 = scmp.eq.s32.totalorder %s28, 1
    %p369 = por %p367, %p368
    %p371 = scmp.ne.s32.totalorder %s354, %s370
    %p372 = scmp.eq.s32.totalorder %s28, 0
    %p373 = por %p371, %p372
    %s374 = ssub.s32 %s22, %s29
    %p375 = scmp.eq.s32.totalorder %s374, 0
    %s377 = sadd.s32 %s376, 1
    %s378 = scalar_select %p375, %s376, %s377
    %p381 = pneg %p375
    %p382 = scmp.eq.s32.totalorder %s22, 1
    %p383 = por %p381, %p382
    %p384 = scmp.ne.s32.totalorder %s376, %s379
    %p385 = scmp.eq.s32.totalorder %s22, 0
    %p386 = por %p384, %p385
    %p387 = scmp.ne.s32.totalorder %s376, %s379
    %p388 = scmp.eq.s32.totalorder %s27, 1
    %p389 = por %p387, %p388
    %p390 = scmp.ne.s32.totalorder %s379, %s380
    %p391 = scmp.eq.s32.totalorder %s27, 0
    %p392 = por %p390, %p391
    %p393 = scmp.ne.s32.totalorder %s379, %s380
    %p394 = scmp.eq.s32.totalorder %s28, 1
    %p395 = por %p393, %p394
    %p397 = scmp.ne.s32.totalorder %s380, %s396
    %p398 = scmp.eq.s32.totalorder %s28, 0
    %p399 = por %p397, %p398
    %s400 = ssub.s32 %s22, %s29
    %p401 = scmp.eq.s32.totalorder %s400, 0
    %s403 = sadd.s32 %s402, 1
    %s404 = scalar_select %p401, %s402, %s403
    %p407 = pneg %p401
    %p408 = scmp.eq.s32.totalorder %s22, 1
    %p409 = por %p407, %p408
    %p410 = scmp.ne.s32.totalorder %s402, %s405
    %p411 = scmp.eq.s32.totalorder %s22, 0
    %p412 = por %p410, %p411
    %p413 = scmp.ne.s32.totalorder %s402, %s405
    %p414 = scmp.eq.s32.totalorder %s27, 1
    %p415 = por %p413, %p414
    %p416 = scmp.ne.s32.totalorder %s405, %s406
    %p417 = scmp.eq.s32.totalorder %s27, 0
    %p418 = por %p416, %p417
    %p419 = scmp.ne.s32.totalorder %s405, %s406
    %p420 = scmp.eq.s32.totalorder %s28, 1
    %p421 = por %p419, %p420
    %p423 = scmp.ne.s32.totalorder %s406, %s422
    %p424 = scmp.eq.s32.totalorder %s28, 0
    %p425 = por %p423, %p424
    %s427 = sadd.s32 %s426, 1
    %p430 = scmp.eq.s32.totalorder %s22, 1
    %p431 = scmp.ne.s32.totalorder %s426, %s428
    %p432 = scmp.eq.s32.totalorder %s22, 0
    %p433 = por %p431, %p432
    %p434 = scmp.ne.s32.totalorder %s426, %s428
    %p435 = scmp.eq.s32.totalorder %s27, 1
    %p436 = por %p434, %p435
    %p437 = scmp.ne.s32.totalorder %s428, %s429
    %p438 = scmp.eq.s32.totalorder %s27, 0
    %p439 = por %p437, %p438
    %p440 = scmp.ne.s32.totalorder %s428, %s429
    %p441 = scmp.eq.s32.totalorder %s28, 1
    %p442 = por %p440, %p441
    %p444 = scmp.ne.s32.totalorder %s429, %s443
    %p445 = scmp.eq.s32.totalorder %s28, 0
    %p446 = por %p444, %p445
    %p447 = scmp.le.s32.totalorder 1, %s22
    %p448 = scmp.lt.s32.totalorder %s22, 3
    %p449 = pnand %p447, %p448
    %p450 = pneg %p449
    // Predicated region
    $region9: #{simple_bert_forward.1} parent=5 // pred_check
      _
    $region10: #{simple_bert_forward.1} parent=5 // pred_check_branch
      %452 = sbr.rel (%p449) target = $region12
    $region11: #{simple_bert_forward.1} parent=5 // pred_region
      %s453 = ssub.s32 %s22, 1
      // Predicated region
      $region13: #{simple_bert_forward.1} parent=11 // pred_check
        %p454 = pneg %p43
      $region14: #{simple_bert_forward.1} parent=11 // pred_check_branch
        %456 = sbr.rel (%p454) target = $region16
      $region15: #{simple_bert_forward.1} parent=11 // pred_region
        _
      $region16: #{simple_bert_forward.1} parent=11 // pred_fallthru
        _
      // Predicated region
      $region17: #{simple_bert_forward.1} parent=11 // pred_check
        %p457 = pneg %p64
      $region18: #{simple_bert_forward.1} parent=11 // pred_check_branch
        %459 = sbr.rel (%p457) target = $region20
      $region19: #{simple_bert_forward.1} parent=11 // pred_region
        _
      $region20: #{simple_bert_forward.1} parent=11 // pred_fallthru
        _
      // Predicated region
      $region21: #{simple_bert_forward.1} parent=11 // pred_check
        %p460 = pneg %p85
      $region22: #{simple_bert_forward.1} parent=11 // pred_check_branch
        %462 = sbr.rel (%p460) target = $region24
      $region23: #{simple_bert_forward.1} parent=11 // pred_region
        _
      $region24: #{simple_bert_forward.1} parent=11 // pred_fallthru
        _
      // Predicated region
      $region25: #{simple_bert_forward.1} parent=11 // pred_check
        %p463 = pneg %p106
      $region26: #{simple_bert_forward.1} parent=11 // pred_check_branch
        %465 = sbr.rel (%p463) target = $region28
      $region27: #{simple_bert_forward.1} parent=11 // pred_region
        _
      $region28: #{simple_bert_forward.1} parent=11 // pred_fallthru
        _
    $region12: #{simple_bert_forward.1} parent=5 // pred_fallthru
      _
    %p466 = scmp.lt.s32.totalorder %s22, 2
    // Predicated region
    $region29: #{simple_bert_forward.1} parent=5 // pred_check
      %p467 = pneg %p466
    $region30: #{simple_bert_forward.1} parent=5 // pred_check_branch
      %469 = sbr.rel (%p467) target = $region32
    $region31: #{simple_bert_forward.1} parent=5 // pred_region
      // Predicated region
      $region33: #{simple_bert_forward.1} parent=31 // pred_check
        %p470 = pneg %p126
      $region34: #{simple_bert_forward.1} parent=31 // pred_check_branch
        %472 = sbr.rel (%p470) target = $region36
      $region35: #{simple_bert_forward.1} parent=31 // pred_region
        %p473 = scmp.lt.s32.totalorder %s22, 1
        %s474 = scalar_select %p473, %s22, 1
        %s475 = smul.addr %s474, 4
        %s476 = smul.addr %s475, 4
        %s477 = scalar_lea.vmem %s4, %s476
      $region36: #{simple_bert_forward.1} parent=31 // pred_fallthru
        _
      // Predicated region
      $region37: #{simple_bert_forward.1} parent=31 // pred_check
        %p478 = pneg %p152
      $region38: #{simple_bert_forward.1} parent=31 // pred_check_branch
        %480 = sbr.rel (%p478) target = $region40
      $region39: #{simple_bert_forward.1} parent=31 // pred_region
        %p481 = scmp.lt.s32.totalorder %s22, 1
        %s482 = scalar_select %p481, %s22, 1
        %s483 = scalar_lea.vmem %s5, %s482
      $region40: #{simple_bert_forward.1} parent=31 // pred_fallthru
        _
      // Predicated region
      $region41: #{simple_bert_forward.1} parent=31 // pred_check
        %p484 = pneg %p178
      $region42: #{simple_bert_forward.1} parent=31 // pred_check_branch
        %486 = sbr.rel (%p484) target = $region44
      $region43: #{simple_bert_forward.1} parent=31 // pred_region
        %p487 = scmp.lt.s32.totalorder %s22, 1
        %s488 = scalar_select %p487, %s22, 1
        %s489 = smul.addr %s488, 4
        %s490 = smul.addr %s489, 4
        %s491 = scalar_lea.vmem %s6, %s490
      $region44: #{simple_bert_forward.1} parent=31 // pred_fallthru
        _
      // Predicated region
      $region45: #{simple_bert_forward.1} parent=31 // pred_check
        %p492 = pneg %p204
      $region46: #{simple_bert_forward.1} parent=31 // pred_check_branch
        %494 = sbr.rel (%p492) target = $region48
      $region47: #{simple_bert_forward.1} parent=31 // pred_region
        %p495 = scmp.lt.s32.totalorder %s22, 1
        %s496 = scalar_select %p495, %s22, 1
        %s497 = scalar_lea.vmem %s7, %s496
      $region48: #{simple_bert_forward.1} parent=31 // pred_fallthru
        _
      // Predicated region
      $region49: #{simple_bert_forward.1} parent=31 // pred_check
        %p498 = pneg %p230
      $region50: #{simple_bert_forward.1} parent=31 // pred_check_branch
        %500 = sbr.rel (%p498) target = $region52
      $region51: #{simple_bert_forward.1} parent=31 // pred_region
        %p501 = scmp.lt.s32.totalorder %s22, 1
        %s502 = scalar_select %p501, %s22, 1
        %s503 = scalar_lea.vmem %s8, %s502
      $region52: #{simple_bert_forward.1} parent=31 // pred_fallthru
        _
      // Predicated region
      $region53: #{simple_bert_forward.1} parent=31 // pred_check
        %p504 = pneg %p256
      $region54: #{simple_bert_forward.1} parent=31 // pred_check_branch
        %506 = sbr.rel (%p504) target = $region56
      $region55: #{simple_bert_forward.1} parent=31 // pred_region
        %p507 = scmp.lt.s32.totalorder %s22, 1
        %s508 = scalar_select %p507, %s22, 1
        %s509 = scalar_lea.vmem %s9, %s508
      $region56: #{simple_bert_forward.1} parent=31 // pred_fallthru
        _
      // Predicated region
      $region57: #{simple_bert_forward.1} parent=31 // pred_check
        %p510 = pneg %p282
      $region58: #{simple_bert_forward.1} parent=31 // pred_check_branch
        %512 = sbr.rel (%p510) target = $region60
      $region59: #{simple_bert_forward.1} parent=31 // pred_region
        %p513 = scmp.lt.s32.totalorder %s22, 1
        %s514 = scalar_select %p513, %s22, 1
        %s515 = smul.addr %s514, 4
        %s516 = smul.addr %s515, 4
        %s517 = scalar_lea.vmem %s10, %s516
      $region60: #{simple_bert_forward.1} parent=31 // pred_fallthru
        _
      // Predicated region
      $region61: #{simple_bert_forward.1} parent=31 // pred_check
        %p518 = pneg %p308
      $region62: #{simple_bert_forward.1} parent=31 // pred_check_branch
        %520 = sbr.rel (%p518) target = $region64
      $region63: #{simple_bert_forward.1} parent=31 // pred_region
        %p521 = scmp.lt.s32.totalorder %s22, 1
        %s522 = scalar_select %p521, %s22, 1
        %s523 = scalar_lea.vmem %s11, %s522
      $region64: #{simple_bert_forward.1} parent=31 // pred_fallthru
        _
      // Predicated region
      $region65: #{simple_bert_forward.1} parent=31 // pred_check
        %p524 = pneg %p334
      $region66: #{simple_bert_forward.1} parent=31 // pred_check_branch
        %526 = sbr.rel (%p524) target = $region68
      $region67: #{simple_bert_forward.1} parent=31 // pred_region
        %p527 = scmp.lt.s32.totalorder %s22, 1
        %s528 = scalar_select %p527, %s22, 1
        %s529 = smul.addr %s528, 8
        %s530 = smul.addr %s529, 4
        %s531 = scalar_lea.vmem %s12, %s530
      $region68: #{simple_bert_forward.1} parent=31 // pred_fallthru
        _
      // Predicated region
      $region69: #{simple_bert_forward.1} parent=31 // pred_check
        %p532 = pneg %p360
      $region70: #{simple_bert_forward.1} parent=31 // pred_check_branch
        %534 = sbr.rel (%p532) target = $region72
      $region71: #{simple_bert_forward.1} parent=31 // pred_region
        %p535 = scmp.lt.s32.totalorder %s22, 1
        %s536 = scalar_select %p535, %s22, 1
        %s537 = scalar_lea.vmem %s13, %s536
      $region72: #{simple_bert_forward.1} parent=31 // pred_fallthru
        _
      // Predicated region
      $region73: #{simple_bert_forward.1} parent=31 // pred_check
        %p538 = pneg %p386
      $region74: #{simple_bert_forward.1} parent=31 // pred_check_branch
        %540 = sbr.rel (%p538) target = $region76
      $region75: #{simple_bert_forward.1} parent=31 // pred_region
        %p541 = scmp.lt.s32.totalorder %s22, 1
        %s542 = scalar_select %p541, %s22, 1
        %s543 = scalar_lea.vmem %s14, %s542
      $region76: #{simple_bert_forward.1} parent=31 // pred_fallthru
        _
      // Predicated region
      $region77: #{simple_bert_forward.1} parent=31 // pred_check
        %p544 = pneg %p412
      $region78: #{simple_bert_forward.1} parent=31 // pred_check_branch
        %546 = sbr.rel (%p544) target = $region80
      $region79: #{simple_bert_forward.1} parent=31 // pred_region
        %p547 = scmp.lt.s32.totalorder %s22, 1
        %s548 = scalar_select %p547, %s22, 1
        %s549 = scalar_lea.vmem %s15, %s548
      $region80: #{simple_bert_forward.1} parent=31 // pred_fallthru
        _
    $region32: #{simple_bert_forward.1} parent=5 // pred_fallthru
      _
    %p550 = scmp.le.s32.totalorder 1, %s22
    %p551 = scmp.lt.s32.totalorder %s22, 3
    %p552 = pnand %p550, %p551
    %p553 = pneg %p552
    // Predicated region
    $region81: #{simple_bert_forward.1} parent=5 // pred_check
      _
    $region82: #{simple_bert_forward.1} parent=5 // pred_check_branch
      %555 = sbr.rel (%p552) target = $region84
    $region83: #{simple_bert_forward.1} parent=5 // pred_region
      %s556 = ssub.s32 %s22, 1
      %p557 = pneg %p43
      %p558 = pneg %p40
      %p559 = pneg %p64
      %p560 = pneg %p61
      %p561 = pneg %p85
      %p562 = pneg %p82
      %p563 = pneg %p106
      %p564 = pneg %p103
      %p565 = scmp.lt.s32.totalorder %s27, 1
      %s566 = scalar_select %p565, %s27, 1
      %s567 = smul.addr %s566, 4
      %s568 = smul.addr %s567, 4
      %s569 = scalar_lea.vmem %s4, %s568
      %p570 = pneg %p132
      %p571 = pneg %p129
      %p572 = scmp.lt.s32.totalorder %s27, 1
      %s573 = scalar_select %p572, %s27, 1
      %s574 = scalar_lea.vmem %s5, %s573
      %p575 = pneg %p158
      %p576 = pneg %p155
      %p577 = scmp.lt.s32.totalorder %s27, 1
      %s578 = scalar_select %p577, %s27, 1
      %s579 = smul.addr %s578, 4
      %s580 = smul.addr %s579, 4
      %s581 = scalar_lea.vmem %s6, %s580
      %p582 = pneg %p184
      %p583 = pneg %p181
      %p584 = scmp.lt.s32.totalorder %s27, 1
      %s585 = scalar_select %p584, %s27, 1
      %s586 = scalar_lea.vmem %s7, %s585
      %p587 = pneg %p210
      %p588 = pneg %p207
      %p589 = scmp.lt.s32.totalorder %s27, 1
      %s590 = scalar_select %p589, %s27, 1
      %s591 = scalar_lea.vmem %s8, %s590
      %p592 = pneg %p236
      %p593 = pneg %p233
      %p594 = scmp.lt.s32.totalorder %s27, 1
      %s595 = scalar_select %p594, %s27, 1
      %s596 = scalar_lea.vmem %s9, %s595
      %p597 = pneg %p262
      %p598 = pneg %p259
      %p599 = scmp.lt.s32.totalorder %s27, 1
      %s600 = scalar_select %p599, %s27, 1
      %s601 = smul.addr %s600, 4
      %s602 = smul.addr %s601, 4
      %s603 = scalar_lea.vmem %s10, %s602
      %p604 = pneg %p288
      %p605 = pneg %p285
      %p606 = scmp.lt.s32.totalorder %s27, 1
      %s607 = scalar_select %p606, %s27, 1
      %s608 = scalar_lea.vmem %s11, %s607
      %p609 = pneg %p314
      %p610 = pneg %p311
      %p611 = scmp.lt.s32.totalorder %s27, 1
      %s612 = scalar_select %p611, %s27, 1
      %s613 = smul.addr %s612, 8
      %s614 = smul.addr %s613, 4
      %s615 = scalar_lea.vmem %s12, %s614
      %p616 = pneg %p340
      %p617 = pneg %p337
      %p618 = scmp.lt.s32.totalorder %s27, 1
      %s619 = scalar_select %p618, %s27, 1
      %s620 = scalar_lea.vmem %s13, %s619
      %p621 = pneg %p366
      %p622 = pneg %p363
      %p623 = scmp.lt.s32.totalorder %s27, 1
      %s624 = scalar_select %p623, %s27, 1
      %s625 = scalar_lea.vmem %s14, %s624
      %p626 = pneg %p392
      %p627 = pneg %p389
      %p628 = scmp.lt.s32.totalorder %s27, 1
      %s629 = scalar_select %p628, %s27, 1
      %s630 = scalar_lea.vmem %s15, %s629
      %p631 = pneg %p418
      %p632 = pneg %p415
      %p633 = pneg %p439
      %p634 = pneg %p436
      %p635 = scmp.lt.s32.totalorder %s27, 1
      %s636 = scalar_select %p635, %s27, 1
      %s637 = smul.addr %s636, 4
      %s638 = smul.addr %s637, 4
      %s639 = scalar_lea.vmem %s4, %s638
      %p640 = scmp.lt.s32.totalorder %s27, 1
      %s641 = scalar_select %p640, %s27, 1
      %s642 = scalar_lea.vmem %s5, %s641
      %p643 = scmp.lt.s32.totalorder %s27, 1
      %s644 = scalar_select %p643, %s27, 1
      %s645 = smul.addr %s644, 4
      %s646 = smul.addr %s645, 4
      %s647 = scalar_lea.vmem %s6, %s646
      %p648 = scmp.lt.s32.totalorder %s27, 1
      %s649 = scalar_select %p648, %s27, 1
      %s650 = scalar_lea.vmem %s7, %s649
      %p651 = scmp.lt.s32.totalorder %s27, 1
      %s652 = scalar_select %p651, %s27, 1
      %s653 = scalar_lea.vmem %s8, %s652
      %p654 = scmp.lt.s32.totalorder %s27, 1
      %s655 = scalar_select %p654, %s27, 1
      %s656 = scalar_lea.vmem %s9, %s655
      %p657 = scmp.lt.s32.totalorder %s27, 1
      %s658 = scalar_select %p657, %s27, 1
      %s659 = smul.addr %s658, 4
      %s660 = smul.addr %s659, 4
      %s661 = scalar_lea.vmem %s10, %s660
      %p662 = scmp.lt.s32.totalorder %s27, 1
      %s663 = scalar_select %p662, %s27, 1
      %s664 = scalar_lea.vmem %s11, %s663
      %p665 = scmp.lt.s32.totalorder %s27, 1
      %s666 = scalar_select %p665, %s27, 1
      %s667 = smul.addr %s666, 8
      %s668 = smul.addr %s667, 4
      %s669 = scalar_lea.vmem %s12, %s668
      %p670 = scmp.lt.s32.totalorder %s27, 1
      %s671 = scalar_select %p670, %s27, 1
      %s672 = scalar_lea.vmem %s13, %s671
      %p673 = scmp.lt.s32.totalorder %s27, 1
      %s674 = scalar_select %p673, %s27, 1
      %s675 = scalar_lea.vmem %s14, %s674
      %p676 = scmp.lt.s32.totalorder %s27, 1
      %s677 = scalar_select %p676, %s27, 1
      %s678 = scalar_lea.vmem %s15, %s677
      %p680 = scmp.eq.s32.totalorder %s27, 0
      // Predicated region
      $region85: #{simple_bert_forward.1} parent=83 // pred_check
        %p681 = pneg %p680
      $region86: #{simple_bert_forward.1} parent=83 // pred_check_branch
        %683 = sbr.rel (%p681) target = $region88
      $region87: #{simple_bert_forward.1} parent=83 // pred_region
        %v684 = vld [vmem:[%s0] sm:$0xff]
        %v685 = vld [vmem:[%s0 + $0x8] sm:$0xff]
        %v686 = vld [vmem:[%s2] sm:$0x1]
        %v687 = vld [vmem:[%s3] sm:$0x1]
        %vm688 = vcmask 261120
        %v689 = vsel %vm688, %v684, 0.0
        %690 = vadd.xlane.f32.xlu0 %v689
        %v691 = vpop.xlane.xlu0 %690
        %v692 = vsel %vm688, %v685, 0.0
        %693 = vadd.xlane.f32.xlu0 %v692
        %v694 = vpop.xlane.xlu0 %693
        %v695 = vrcp.pop 32.0
        %v696 = vmul.f32 %v691, %v695
        %v697 = vmul.f32 %v694, %v695
        %v698 = vsub.f32 %v684, %v696
        %v699 = vsub.f32 %v685, %v697
        %v700 = vmul.f32 %v698, %v698
        %v701 = vmul.f32 %v699, %v699
        %v702 = vsel %vm688, %v700, 0.0
        %703 = vadd.xlane.f32.xlu0 %v702
        %v704 = vpop.xlane.xlu0 %703
        %v705 = vsel %vm688, %v701, 0.0
        %706 = vadd.xlane.f32.xlu0 %v705
        %v707 = vpop.xlane.xlu0 %706
        %v708 = vmul.f32 %v704, %v695
        %v709 = vmul.f32 %v707, %v695
        %v710 = vadd.f32 %v708, 1e-12
        %v711 = vadd.f32 %v709, 1e-12
        %v712 = vrsqrt.pop %v710
        %v713 = vrsqrt.pop %v711
        %v714 = vmul.f32 %v698, %v712
        %v715 = vmul.f32 %v699, %v713
        %v717 = vlaneseq
        %v718 = vshrl.u32 %v717, 7
        %v719 = vsub.s32 0, %v718
        %v720 = vrot.slane %v686, %v719
        %v722 = vmul.f32 %v714, %v720
        %v723 = vmul.f32 %v715, %v720
        %v725 = vlaneseq
        %v726 = vshrl.u32 %v725, 7
        %v727 = vsub.s32 0, %v726
        %v728 = vrot.slane %v687, %v727
        %v730 = vadd.f32 %v722, %v728
        %v731 = vadd.f32 %v723, %v728
        %732 = vst.msk [vmem:[#allocation2] sm:$0xff] %vm688, %v730
        %733 = vst.msk [vmem:[#allocation2 + $0x8] sm:$0xff] %vm688, %v731
      $region88: #{simple_bert_forward.1} parent=83 // pred_fallthru
        _
      %v734 = vld [vmem:[#allocation2] sm:$0xff]
      %v735 = vld [vmem:[#allocation2 + $0x8] sm:$0xff]
      %v736 = vpack.c.bf16 %v735, %v734
      %v737 = vld [vmem:[%s639] sm:$0xf]
      %v738 = vld [vmem:[%s639 + $0x4] sm:$0xf]
      %v739 = vld [vmem:[%s639 + $0x8] sm:$0xf]
      %v740 = vld [vmem:[%s639 + $0xc] sm:$0xf]
      %v741 = vld [vmem:[%s642] sm:$0x1]
      %v743 = vlaneseq
      %v744 = vshrl.u32 %v743, 7
      %v745 = vsub.s32 0, %v744
      %v746 = vrot.slane %v741, %v745
      %v752 = vunpack.c.l.b16 %v737
      %v753 = vunpack.c.l.b16 %v738
      %v754 = vunpack.c.l.b16 %v739
      %v755 = vunpack.c.l.b16 %v740
      %v756 = vpack.c.b16 %v753, %v752
      %v757 = vpack.c.b16 %v755, %v754
      %vm760 = vcmask 261120
      %v762 = vsel %vm760, %v736, 0
      %764 = vmatprep.subr.bf16.mxu0 0
      %765 = vmatpush1.bf16.msra.mxu0 %v756
      %766 = vmatprep.subr.bf16.mxu0 0
      %767 = vmatpush1.bf16.msra.mxu0 %v757
      %768 = vmatprep.subr.bf16.mxu0 0
      %769 = vmatpush1.bf16.msra.mxu0 0
      %770 = vmatprep.subr.bf16.mxu0 0
      %771 = vmatpush1.bf16.msra.mxu0 0
      %772 = vmatprep.subr.bf16.mxu0 0
      %773 = vmatpush1.bf16.msra.mxu0 0
      %774 = vmatprep.subr.bf16.mxu0 0
      %775 = vmatpush1.bf16.msra.mxu0 0
      %776 = vmatprep.subr.bf16.mxu0 0
      %777 = vmatpush1.bf16.msra.mxu0 0
      %778 = vmatprep.subr.bf16.mxu0 0
      %779 = vmatpush1.bf16.msra.mxu0 0
      %780 = vmatprep.subr.bf16.mxu0 0
      %781 = vmatpush1.bf16.msra.mxu0 0
      %782 = vmatprep.subr.bf16.mxu0 0
      %783 = vmatpush1.bf16.msra.mxu0 0
      %784 = vmatprep.subr.bf16.mxu0 0
      %785 = vmatpush1.bf16.msra.mxu0 0
      %786 = vmatprep.subr.bf16.mxu0 0
      %787 = vmatpush1.bf16.msra.mxu0 0
      %788 = vmatprep.subr.bf16.mxu0 0
      %789 = vmatpush1.bf16.msra.mxu0 0
      %790 = vmatprep.subr.bf16.mxu0 0
      %791 = vmatpush1.bf16.msra.mxu0 0
      %792 = vmatprep.subr.bf16.mxu0 0
      %793 = vmatpush1.bf16.msra.mxu0 0
      %794 = vmatprep.subr.bf16.mxu0 0
      %795 = vmatpush1.bf16.msra.mxu0 0
      %796 = vmatprep.mubr.bf16.mxu0 0
      %797 = vmatmul.mubr.bf16.gmra.mrb[0].mxu0 %v762
      %v798 = vpop.f32.mrb[0].mxu0
      %v799 = vadd.f32 %v746, %v798
      %v800 = vpop.f32.mrb[0].mxu0
      %v801 = vpop.f32.mrb[0].mxu0
      %v802 = vadd.f32 %v746, %v801
      %v803 = vpop.f32.mrb[0].mxu0
      %804 = vdwg.mxu0
      %v805 = vld [vmem:[%s647] sm:$0xf]
      %v806 = vld [vmem:[%s647 + $0x4] sm:$0xf]
      %v807 = vld [vmem:[%s647 + $0x8] sm:$0xf]
      %v808 = vld [vmem:[%s647 + $0xc] sm:$0xf]
      %v809 = vld [vmem:[%s1] sm:$0x1]
      %v810 = vlaneseq
      %v811 = vshrl.u32 %v810, 7
      %v812 = vsub.s32 0, %v811
      %v813 = vrot.slane %v809, %v812
      %v814 = vpack.c.bf16 %v799, %v799
      %816 = vrot.lane.b32.xlu0 %v814, 96
      %v817 = vpop.permute.xlu0 %816
      %vm818 = vcmask 64512
      %v820 = vsel %vm818, %v814, 0
      %v823 = vsel %vm818, %v817, 0
      %825 = vmatprep.subr.bf16.mxu0 0
      %826 = vmatpush1.bf16.xpose.msra.mxu0 %v823
      %827 = vmatprep.subr.bf16.mxu0 0
      %828 = vmatpush1.bf16.xpose.msra.mxu0 0
      %829 = vmatprep.subr.bf16.mxu0 0
      %830 = vmatpush1.bf16.xpose.msra.mxu0 0
      %831 = vmatprep.subr.bf16.mxu0 0
      %832 = vmatpush1.bf16.xpose.msra.mxu0 0
      %833 = vmatprep.subr.bf16.mxu0 0
      %834 = vmatpush1.bf16.xpose.msra.mxu0 0
      %835 = vmatprep.subr.bf16.mxu0 0
      %836 = vmatpush1.bf16.xpose.msra.mxu0 0
      %837 = vmatprep.subr.bf16.mxu0 0
      %838 = vmatpush1.bf16.xpose.msra.mxu0 0
      %839 = vmatprep.subr.bf16.mxu0 0
      %840 = vmatpush1.bf16.xpose.msra.mxu0 0
      %841 = vmatprep.subr.bf16.mxu0 0
      %842 = vmatpush1.bf16.xpose.msra.mxu0 0
      %843 = vmatprep.subr.bf16.mxu0 0
      %844 = vmatpush1.bf16.xpose.msra.mxu0 0
      %845 = vmatprep.subr.bf16.mxu0 0
      %846 = vmatpush1.bf16.xpose.msra.mxu0 0
      %847 = vmatprep.subr.bf16.mxu0 0
      %848 = vmatpush1.bf16.xpose.msra.mxu0 0
      %849 = vmatprep.subr.bf16.mxu0 0
      %850 = vmatpush1.bf16.xpose.msra.mxu0 0
      %851 = vmatprep.subr.bf16.mxu0 0
      %852 = vmatpush1.bf16.xpose.msra.mxu0 0
      %853 = vmatprep.subr.bf16.mxu0 0
      %854 = vmatpush1.bf16.xpose.msra.mxu0 0
      %855 = vmatprep.subr.bf16.mxu0 0
      %856 = vmatpush1.bf16.xpose.msra.mxu0 0
      %857 = vmatprep.mubr.bf16.mxu0 0
      %858 = vmatmul.mubr.bf16.gmra.mrb[0].mxu0 %v820
      %v859 = vpop.f32.mrb[0].mxu0
      %v860 = vadd.f32 0.0, %v859
      %v861 = vpop.f32.mrb[0].mxu0
      %v862 = vpop.f32.mrb[0].mxu0
      %v863 = vpop.f32.mrb[0].mxu0
      %864 = vdwg.mxu0
      %v865 = vmul.f32 %v860, 0.35355338
      %v866 = vadd.f32 %v865, %v813
      %v867 = vsel %vm818, %v866, -inf
      %868 = vmax.xlane.f32.xlu0 %v867
      %v869 = vpop.xlane.xlu0 %868
      %v870 = vsub.f32 %v866, %v869
      %v871 = vmul.f32 %v870, 1.442695
      %v872 = vpow.pop %v871
      %v873 = vsel %vm818, %v872, 0.0
      %874 = vadd.xlane.f32.xlu0 %v873
      %v875 = vpop.xlane.xlu0 %874
      %v876 = vrcp.pop %v875
      %v877 = vmul.f32 %v872, %v876
      %v878 = vpack.c.bf16 %v877, %v877
      %879 = vrot.lane.b32.xlu0 %v814, 64
      %v880 = vpop.permute.xlu0 %879
      %v882 = vsel %vm818, %v878, 0
      %vm884 = vcmask 1043456
      %v886 = vsel %vm884, %v880, 0
      %888 = vmatprep.subr.bf16.mxu0 0
      %889 = vmatpush1.bf16.msra.mxu0 %v886
      %890 = vmatprep.subr.bf16.mxu0 0
      %891 = vmatpush1.bf16.msra.mxu0 0
      %892 = vmatprep.subr.bf16.mxu0 0
      %893 = vmatpush1.bf16.msra.mxu0 0
      %894 = vmatprep.subr.bf16.mxu0 0
      %895 = vmatpush1.bf16.msra.mxu0 0
      %896 = vmatprep.subr.bf16.mxu0 0
      %897 = vmatpush1.bf16.msra.mxu0 0
      %898 = vmatprep.subr.bf16.mxu0 0
      %899 = vmatpush1.bf16.msra.mxu0 0
      %900 = vmatprep.subr.bf16.mxu0 0
      %901 = vmatpush1.bf16.msra.mxu0 0
      %902 = vmatprep.subr.bf16.mxu0 0
      %903 = vmatpush1.bf16.msra.mxu0 0
      %904 = vmatprep.subr.bf16.mxu0 0
      %905 = vmatpush1.bf16.msra.mxu0 0
      %906 = vmatprep.subr.bf16.mxu0 0
      %907 = vmatpush1.bf16.msra.mxu0 0
      %908 = vmatprep.subr.bf16.mxu0 0
      %909 = vmatpush1.bf16.msra.mxu0 0
      %910 = vmatprep.subr.bf16.mxu0 0
      %911 = vmatpush1.bf16.msra.mxu0 0
      %912 = vmatprep.subr.bf16.mxu0 0
      %913 = vmatpush1.bf16.msra.mxu0 0
      %914 = vmatprep.subr.bf16.mxu0 0
      %915 = vmatpush1.bf16.msra.mxu0 0
      %916 = vmatprep.subr.bf16.mxu0 0
      %917 = vmatpush1.bf16.msra.mxu0 0
      %918 = vmatprep.subr.bf16.mxu0 0
      %919 = vmatpush1.bf16.msra.mxu0 0
      %920 = vmatprep.mubr.bf16.mxu0 0
      %921 = vmatmul.mubr.bf16.gmra.mrb[0].mxu0 %v882
      %v922 = vpop.f32.mrb[0].mxu0
      %v923 = vadd.f32 0.0, %v922
      %v924 = vpop.f32.mrb[0].mxu0
      %v925 = vpop.f32.mrb[0].mxu0
      %v926 = vpop.f32.mrb[0].mxu0
      %927 = vdwg.mxu0
      %928 = vrot.lane.b32.xlu0 %v814, 120
      %v929 = vpop.permute.xlu0 %928
      %930 = vrot.lane.b32.xlu0 %v814, 88
      %v931 = vpop.permute.xlu0 %930
      %v933 = vsel %vm818, %v929, 0
      %v936 = vsel %vm818, %v931, 0
      %938 = vmatprep.subr.bf16.mxu0 0
      %939 = vmatpush1.bf16.xpose.msra.mxu0 %v936
      %940 = vmatprep.subr.bf16.mxu0 0
      %941 = vmatpush1.bf16.xpose.msra.mxu0 0
      %942 = vmatprep.subr.bf16.mxu0 0
      %943 = vmatpush1.bf16.xpose.msra.mxu0 0
      %944 = vmatprep.subr.bf16.mxu0 0
      %945 = vmatpush1.bf16.xpose.msra.mxu0 0
      %946 = vmatprep.subr.bf16.mxu0 0
      %947 = vmatpush1.bf16.xpose.msra.mxu0 0
      %948 = vmatprep.subr.bf16.mxu0 0
      %949 = vmatpush1.bf16.xpose.msra.mxu0 0
      %950 = vmatprep.subr.bf16.mxu0 0
      %951 = vmatpush1.bf16.xpose.msra.mxu0 0
      %952 = vmatprep.subr.bf16.mxu0 0
      %953 = vmatpush1.bf16.xpose.msra.mxu0 0
      %954 = vmatprep.subr.bf16.mxu0 0
      %955 = vmatpush1.bf16.xpose.msra.mxu0 0
      %956 = vmatprep.subr.bf16.mxu0 0
      %957 = vmatpush1.bf16.xpose.msra.mxu0 0
      %958 = vmatprep.subr.bf16.mxu0 0
      %959 = vmatpush1.bf16.xpose.msra.mxu0 0
      %960 = vmatprep.subr.bf16.mxu0 0
      %961 = vmatpush1.bf16.xpose.msra.mxu0 0
      %962 = vmatprep.subr.bf16.mxu0 0
      %963 = vmatpush1.bf16.xpose.msra.mxu0 0
      %964 = vmatprep.subr.bf16.mxu0 0
      %965 = vmatpush1.bf16.xpose.msra.mxu0 0
      %966 = vmatprep.subr.bf16.mxu0 0
      %967 = vmatpush1.bf16.xpose.msra.mxu0 0
      %968 = vmatprep.subr.bf16.mxu0 0
      %969 = vmatpush1.bf16.xpose.msra.mxu0 0
      %970 = vmatprep.mubr.bf16.mxu0 0
      %971 = vmatmul.mubr.bf16.gmra.mrb[0].mxu0 %v933
      %v972 = vpop.f32.mrb[0].mxu0
      %v973 = vadd.f32 0.0, %v972
      %v974 = vpop.f32.mrb[0].mxu0
      %v975 = vpop.f32.mrb[0].mxu0
      %v976 = vpop.f32.mrb[0].mxu0
      %977 = vdwg.mxu0
      %v978 = vmul.f32 %v973, 0.35355338
      %v979 = vadd.f32 %v978, %v813
      %v980 = vsel %vm818, %v979, -inf
      %981 = vmax.xlane.f32.xlu0 %v980
      %v982 = vpop.xlane.xlu0 %981
      %v983 = vsub.f32 %v979, %v982
      %v984 = vmul.f32 %v983, 1.442695
      %v985 = vpow.pop %v984
      %v986 = vsel %vm818, %v985, 0.0
      %987 = vadd.xlane.f32.xlu0 %v986
      %v988 = vpop.xlane.xlu0 %987
      %v989 = vrcp.pop %v988
      %v990 = vmul.f32 %v985, %v989
      %v991 = vpack.c.bf16 %v990, %v990
      %992 = vrot.lane.b32.xlu0 %v814, 56
      %v993 = vpop.permute.xlu0 %992
      %v995 = vsel %vm818, %v991, 0
      %v998 = vsel %vm884, %v993, 0
      %1000 = vmatprep.subr.bf16.mxu0 0
      %1001 = vmatpush1.bf16.msra.mxu0 %v998
      %1002 = vmatprep.subr.bf16.mxu0 0
      %1003 = vmatpush1.bf16.msra.mxu0 0
      %1004 = vmatprep.subr.bf16.mxu0 0
      %1005 = vmatpush1.bf16.msra.mxu0 0
      %1006 = vmatprep.subr.bf16.mxu0 0
      %1007 = vmatpush1.bf16.msra.mxu0 0
      %1008 = vmatprep.subr.bf16.mxu0 0
      %1009 = vmatpush1.bf16.msra.mxu0 0
      %1010 = vmatprep.subr.bf16.mxu0 0
      %1011 = vmatpush1.bf16.msra.mxu0 0
      %1012 = vmatprep.subr.bf16.mxu0 0
      %1013 = vmatpush1.bf16.msra.mxu0 0
      %1014 = vmatprep.subr.bf16.mxu0 0
      %1015 = vmatpush1.bf16.msra.mxu0 0
      %1016 = vmatprep.subr.bf16.mxu0 0
      %1017 = vmatpush1.bf16.msra.mxu0 0
      %1018 = vmatprep.subr.bf16.mxu0 0
      %1019 = vmatpush1.bf16.msra.mxu0 0
      %1020 = vmatprep.subr.bf16.mxu0 0
      %1021 = vmatpush1.bf16.msra.mxu0 0
      %1022 = vmatprep.subr.bf16.mxu0 0
      %1023 = vmatpush1.bf16.msra.mxu0 0
      %1024 = vmatprep.subr.bf16.mxu0 0
      %1025 = vmatpush1.bf16.msra.mxu0 0
      %1026 = vmatprep.subr.bf16.mxu0 0
      %1027 = vmatpush1.bf16.msra.mxu0 0
      %1028 = vmatprep.subr.bf16.mxu0 0
      %1029 = vmatpush1.bf16.msra.mxu0 0
      %1030 = vmatprep.subr.bf16.mxu0 0
      %1031 = vmatpush1.bf16.msra.mxu0 0
      %1032 = vmatprep.mubr.bf16.mxu0 0
      %1033 = vmatmul.mubr.bf16.gmra.mrb[0].mxu0 %v995
      %v1034 = vpop.f32.mrb[0].mxu0
      %v1035 = vadd.f32 0.0, %v1034
      %v1036 = vpop.f32.mrb[0].mxu0
      %v1037 = vpop.f32.mrb[0].mxu0
      %v1038 = vpop.f32.mrb[0].mxu0
      %1039 = vdwg.mxu0
      %1040 = vrot.lane.b32.xlu0 %v814, 112
      %v1041 = vpop.permute.xlu0 %1040
      %1042 = vrot.lane.b32.xlu0 %v814, 80
      %v1043 = vpop.permute.xlu0 %1042
      %v1045 = vsel %vm818, %v1041, 0
      %v1048 = vsel %vm818, %v1043, 0
      %1050 = vmatprep.subr.bf16.mxu0 0
      %1051 = vmatpush1.bf16.xpose.msra.mxu0 %v1048
      %1052 = vmatprep.subr.bf16.mxu0 0
      %1053 = vmatpush1.bf16.xpose.msra.mxu0 0
      %1054 = vmatprep.subr.bf16.mxu0 0
      %1055 = vmatpush1.bf16.xpose.msra.mxu0 0
      %1056 = vmatprep.subr.bf16.mxu0 0
      %1057 = vmatpush1.bf16.xpose.msra.mxu0 0
      %1058 = vmatprep.subr.bf16.mxu0 0
      %1059 = vmatpush1.bf16.xpose.msra.mxu0 0
      %1060 = vmatprep.subr.bf16.mxu0 0
      %1061 = vmatpush1.bf16.xpose.msra.mxu0 0
      %1062 = vmatprep.subr.bf16.mxu0 0
      %1063 = vmatpush1.bf16.xpose.msra.mxu0 0
      %1064 = vmatprep.subr.bf16.mxu0 0
      %1065 = vmatpush1.bf16.xpose.msra.mxu0 0
      %1066 = vmatprep.subr.bf16.mxu0 0
      %1067 = vmatpush1.bf16.xpose.msra.mxu0 0
      %1068 = vmatprep.subr.bf16.mxu0 0
      %1069 = vmatpush1.bf16.xpose.msra.mxu0 0
      %1070 = vmatprep.subr.bf16.mxu0 0
      %1071 = vmatpush1.bf16.xpose.msra.mxu0 0
      %1072 = vmatprep.subr.bf16.mxu0 0
      %1073 = vmatpush1.bf16.xpose.msra.mxu0 0
      %1074 = vmatprep.subr.bf16.mxu0 0
      %1075 = vmatpush1.bf16.xpose.msra.mxu0 0
      %1076 = vmatprep.subr.bf16.mxu0 0
      %1077 = vmatpush1.bf16.xpose.msra.mxu0 0
      %1078 = vmatprep.subr.bf16.mxu0 0
      %1079 = vmatpush1.bf16.xpose.msra.mxu0 0
      %1080 = vmatprep.subr.bf16.mxu0 0
      %1081 = vmatpush1.bf16.xpose.msra.mxu0 0
      %1082 = vmatprep.mubr.bf16.mxu0 0
      %1083 = vmatmul.mubr.bf16.gmra.mrb[0].mxu0 %v1045
      %v1084 = vpop.f32.mrb[0].mxu0
      %v1085 = vadd.f32 0.0, %v1084
      %v1086 = vpop.f32.mrb[0].mxu0
      %v1087 = vpop.f32.mrb[0].mxu0
      %v1088 = vpop.f32.mrb[0].mxu0
      %1089 = vdwg.mxu0
      %v1090 = vmul.f32 %v1085, 0.35355338
      %v1091 = vadd.f32 %v1090, %v813
      %v1092 = vsel %vm818, %v1091, -inf
      %1093 = vmax.xlane.f32.xlu0 %v1092
      %v1094 = vpop.xlane.xlu0 %1093
      %v1095 = vsub.f32 %v1091, %v1094
      %v1096 = vmul.f32 %v1095, 1.442695
      %v1097 = vpow.pop %v1096
      %v1098 = vsel %vm818, %v1097, 0.0
      %1099 = vadd.xlane.f32.xlu0 %v1098
      %v1100 = vpop.xlane.xlu0 %1099
      %v1101 = vrcp.pop %v1100
      %v1102 = vmul.f32 %v1097, %v1101
      %v1103 = vpack.c.bf16 %v1102, %v1102
      %1104 = vrot.lane.b32.xlu0 %v814, 48
      %v1105 = vpop.permute.xlu0 %1104
      %v1107 = vsel %vm818, %v1103, 0
      %v1110 = vsel %vm884, %v1105, 0
      %1112 = vmatprep.subr.bf16.mxu0 0
      %1113 = vmatpush1.bf16.msra.mxu0 %v1110
      %1114 = vmatprep.subr.bf16.mxu0 0
      %1115 = vmatpush1.bf16.msra.mxu0 0
      %1116 = vmatprep.subr.bf16.mxu0 0
      %1117 = vmatpush1.bf16.msra.mxu0 0
      %1118 = vmatprep.subr.bf16.mxu0 0
      %1119 = vmatpush1.bf16.msra.mxu0 0
      %1120 = vmatprep.subr.bf16.mxu0 0
      %1121 = vmatpush1.bf16.msra.mxu0 0
      %1122 = vmatprep.subr.bf16.mxu0 0
      %1123 = vmatpush1.bf16.msra.mxu0 0
      %1124 = vmatprep.subr.bf16.mxu0 0
      %1125 = vmatpush1.bf16.msra.mxu0 0
      %1126 = vmatprep.subr.bf16.mxu0 0
      %1127 = vmatpush1.bf16.msra.mxu0 0
      %1128 = vmatprep.subr.bf16.mxu0 0
      %1129 = vmatpush1.bf16.msra.mxu0 0
      %1130 = vmatprep.subr.bf16.mxu0 0
      %1131 = vmatpush1.bf16.msra.mxu0 0
      %1132 = vmatprep.subr.bf16.mxu0 0
      %1133 = vmatpush1.bf16.msra.mxu0 0
      %1134 = vmatprep.subr.bf16.mxu0 0
      %1135 = vmatpush1.bf16.msra.mxu0 0
      %1136 = vmatprep.subr.bf16.mxu0 0
      %1137 = vmatpush1.bf16.msra.mxu0 0
      %1138 = vmatprep.subr.bf16.mxu0 0
      %1139 = vmatpush1.bf16.msra.mxu0 0
      %1140 = vmatprep.subr.bf16.mxu0 0
      %1141 = vmatpush1.bf16.msra.mxu0 0
      %1142 = vmatprep.subr.bf16.mxu0 0
      %1143 = vmatpush1.bf16.msra.mxu0 0
      %1144 = vmatprep.mubr.bf16.mxu0 0
      %1145 = vmatmul.mubr.bf16.gmra.mrb[0].mxu0 %v1107
      %v1146 = vpop.f32.mrb[0].mxu0
      %v1147 = vadd.f32 0.0, %v1146
      %v1148 = vpop.f32.mrb[0].mxu0
      %v1149 = vpop.f32.mrb[0].mxu0
      %v1150 = vpop.f32.mrb[0].mxu0
      %1151 = vdwg.mxu0
      %1152 = vrot.lane.b32.xlu0 %v814, 104
      %v1153 = vpop.permute.xlu0 %1152
      %1154 = vrot.lane.b32.xlu0 %v814, 72
      %v1155 = vpop.permute.xlu0 %1154
      %v1157 = vsel %vm818, %v1153, 0
      %v1160 = vsel %vm818, %v1155, 0
      %1162 = vmatprep.subr.bf16.mxu0 0
      %1163 = vmatpush1.bf16.xpose.msra.mxu0 %v1160
      %1164 = vmatprep.subr.bf16.mxu0 0
      %1165 = vmatpush1.bf16.xpose.msra.mxu0 0
      %1166 = vmatprep.subr.bf16.mxu0 0
      %1167 = vmatpush1.bf16.xpose.msra.mxu0 0
      %1168 = vmatprep.subr.bf16.mxu0 0
      %1169 = vmatpush1.bf16.xpose.msra.mxu0 0
      %1170 = vmatprep.subr.bf16.mxu0 0
      %1171 = vmatpush1.bf16.xpose.msra.mxu0 0
      %1172 = vmatprep.subr.bf16.mxu0 0
      %1173 = vmatpush1.bf16.xpose.msra.mxu0 0
      %1174 = vmatprep.subr.bf16.mxu0 0
      %1175 = vmatpush1.bf16.xpose.msra.mxu0 0
      %1176 = vmatprep.subr.bf16.mxu0 0
      %1177 = vmatpush1.bf16.xpose.msra.mxu0 0
      %1178 = vmatprep.subr.bf16.mxu0 0
      %1179 = vmatpush1.bf16.xpose.msra.mxu0 0
      %1180 = vmatprep.subr.bf16.mxu0 0
      %1181 = vmatpush1.bf16.xpose.msra.mxu0 0
      %1182 = vmatprep.subr.bf16.mxu0 0
      %1183 = vmatpush1.bf16.xpose.msra.mxu0 0
      %1184 = vmatprep.subr.bf16.mxu0 0
      %1185 = vmatpush1.bf16.xpose.msra.mxu0 0
      %1186 = vmatprep.subr.bf16.mxu0 0
      %1187 = vmatpush1.bf16.xpose.msra.mxu0 0
      %1188 = vmatprep.subr.bf16.mxu0 0
      %1189 = vmatpush1.bf16.xpose.msra.mxu0 0
      %1190 = vmatprep.subr.bf16.mxu0 0
      %1191 = vmatpush1.bf16.xpose.msra.mxu0 0
      %1192 = vmatprep.subr.bf16.mxu0 0
      %1193 = vmatpush1.bf16.xpose.msra.mxu0 0
      %1194 = vmatprep.mubr.bf16.mxu0 0
      %1195 = vmatmul.mubr.bf16.gmra.mrb[0].mxu0 %v1157
      %v1196 = vpop.f32.mrb[0].mxu0
      %v1197 = vadd.f32 0.0, %v1196
      %v1198 = vpop.f32.mrb[0].mxu0
      %v1199 = vpop.f32.mrb[0].mxu0
      %v1200 = vpop.f32.mrb[0].mxu0
      %1201 = vdwg.mxu0
      %v1202 = vmul.f32 %v1197, 0.35355338
      %v1203 = vadd.f32 %v1202, %v813
      %v1204 = vsel %vm818, %v1203, -inf
      %1205 = vmax.xlane.f32.xlu0 %v1204
      %v1206 = vpop.xlane.xlu0 %1205
      %v1207 = vsub.f32 %v1203, %v1206
      %v1208 = vmul.f32 %v1207, 1.442695
      %v1209 = vpow.pop %v1208
      %v1210 = vsel %vm818, %v1209, 0.0
      %1211 = vadd.xlane.f32.xlu0 %v1210
      %v1212 = vpop.xlane.xlu0 %1211
      %v1213 = vrcp.pop %v1212
      %v1214 = vmul.f32 %v1209, %v1213
      %v1215 = vpack.c.bf16 %v1214, %v1214
      %1216 = vrot.lane.b32.xlu0 %v814, 40
      %v1217 = vpop.permute.xlu0 %1216
      %v1219 = vsel %vm818, %v1215, 0
      %v1222 = vsel %vm884, %v1217, 0
      %1224 = vmatprep.subr.bf16.mxu0 0
      %1225 = vmatpush1.bf16.msra.mxu0 %v1222
      %1226 = vmatprep.subr.bf16.mxu0 0
      %1227 = vmatpush1.bf16.msra.mxu0 0
      %1228 = vmatprep.subr.bf16.mxu0 0
      %1229 = vmatpush1.bf16.msra.mxu0 0
      %1230 = vmatprep.subr.bf16.mxu0 0
      %1231 = vmatpush1.bf16.msra.mxu0 0
      %1232 = vmatprep.subr.bf16.mxu0 0
      %1233 = vmatpush1.bf16.msra.mxu0 0
      %1234 = vmatprep.subr.bf16.mxu0 0
      %1235 = vmatpush1.bf16.msra.mxu0 0
      %1236 = vmatprep.subr.bf16.mxu0 0
      %1237 = vmatpush1.bf16.msra.mxu0 0
      %1238 = vmatprep.subr.bf16.mxu0 0
      %1239 = vmatpush1.bf16.msra.mxu0 0
      %1240 = vmatprep.subr.bf16.mxu0 0
      %1241 = vmatpush1.bf16.msra.mxu0 0
      %1242 = vmatprep.subr.bf16.mxu0 0
      %1243 = vmatpush1.bf16.msra.mxu0 0
      %1244 = vmatprep.subr.bf16.mxu0 0
      %1245 = vmatpush1.bf16.msra.mxu0 0
      %1246 = vmatprep.subr.bf16.mxu0 0
      %1247 = vmatpush1.bf16.msra.mxu0 0
      %1248 = vmatprep.subr.bf16.mxu0 0
      %1249 = vmatpush1.bf16.msra.mxu0 0
      %1250 = vmatprep.subr.bf16.mxu0 0
      %1251 = vmatpush1.bf16.msra.mxu0 0
      %1252 = vmatprep.subr.bf16.mxu0 0
      %1253 = vmatpush1.bf16.msra.mxu0 0
      %1254 = vmatprep.subr.bf16.mxu0 0
      %1255 = vmatpush1.bf16.msra.mxu0 0
      %1256 = vmatprep.mubr.bf16.mxu0 0
      %1257 = vmatmul.mubr.bf16.gmra.mrb[0].mxu0 %v1219
      %v1258 = vpop.f32.mrb[0].mxu0
      %v1259 = vadd.f32 0.0, %v1258
      %v1260 = vpop.f32.mrb[0].mxu0
      %v1261 = vpop.f32.mrb[0].mxu0
      %v1262 = vpop.f32.mrb[0].mxu0
      %1263 = vdwg.mxu0
      %1265 = vrot.lane.b32.xlu0 %v1035, 8
      %v1266 = vpop.permute.xlu0 %1265
      %1269 = vrot.lane.b32.xlu0 %v1147, 16
      %v1270 = vpop.permute.xlu0 %1269
      %1273 = vrot.lane.b32.xlu0 %v1259, 24
      %v1274 = vpop.permute.xlu0 %1273
      %v1276 = vsel %vm818, %v923, %v1266
      %vm1277 = vcmask 130048
      %v1278 = vsel %vm1277, %v1276, %v1270
      %vm1279 = vcmask 195584
      %v1280 = vsel %vm1279, %v1278, %v1274
      %v1281 = vpack.c.bf16 %v1280, %v1280
      %v1286 = vunpack.c.l.b16 %v805
      %v1287 = vunpack.c.l.b16 %v806
      %v1288 = vunpack.c.l.b16 %v807
      %v1289 = vunpack.c.l.b16 %v808
      %v1290 = vpack.c.b16 %v1287, %v1286
      %v1291 = vpack.c.b16 %v1289, %v1288
      %v1295 = vsel %vm760, %v1281, 0
      %1297 = vmatprep.subr.bf16.mxu0 0
      %1298 = vmatpush1.bf16.msra.mxu0 %v1290
      %1299 = vmatprep.subr.bf16.mxu0 0
      %1300 = vmatpush1.bf16.msra.mxu0 %v1291
      %1301 = vmatprep.subr.bf16.mxu0 0
      %1302 = vmatpush1.bf16.msra.mxu0 0
      %1303 = vmatprep.subr.bf16.mxu0 0
      %1304 = vmatpush1.bf16.msra.mxu0 0
      %1305 = vmatprep.subr.bf16.mxu0 0
      %1306 = vmatpush1.bf16.msra.mxu0 0
      %1307 = vmatprep.subr.bf16.mxu0 0
      %1308 = vmatpush1.bf16.msra.mxu0 0
      %1309 = vmatprep.subr.bf16.mxu0 0
      %1310 = vmatpush1.bf16.msra.mxu0 0
      %1311 = vmatprep.subr.bf16.mxu0 0
      %1312 = vmatpush1.bf16.msra.mxu0 0
      %1313 = vmatprep.subr.bf16.mxu0 0
      %1314 = vmatpush1.bf16.msra.mxu0 0
      %1315 = vmatprep.subr.bf16.mxu0 0
      %1316 = vmatpush1.bf16.msra.mxu0 0
      %1317 = vmatprep.subr.bf16.mxu0 0
      %1318 = vmatpush1.bf16.msra.mxu0 0
      %1319 = vmatprep.subr.bf16.mxu0 0
      %1320 = vmatpush1.bf16.msra.mxu0 0
      %1321 = vmatprep.subr.bf16.mxu0 0
      %1322 = vmatpush1.bf16.msra.mxu0 0
      %1323 = vmatprep.subr.bf16.mxu0 0
      %1324 = vmatpush1.bf16.msra.mxu0 0
      %1325 = vmatprep.subr.bf16.mxu0 0
      %1326 = vmatpush1.bf16.msra.mxu0 0
      %1327 = vmatprep.subr.bf16.mxu0 0
      %1328 = vmatpush1.bf16.msra.mxu0 0
      %1329 = vmatprep.mubr.bf16.mxu0 0
      %1330 = vmatmul.mubr.bf16.gmra.mrb[0].mxu0 %v1295
      %v1331 = vpop.f32.mrb[0].mxu0
      %v1332 = vadd.f32 0.0, %v1331
      %v1333 = vpop.f32.mrb[0].mxu0
      %v1334 = vpop.f32.mrb[0].mxu0
      %v1335 = vpop.f32.mrb[0].mxu0
      %1336 = vdwg.mxu0
      %1337 = vst.msk [vmem:[#allocation3] sm:$0xff] %vm760, %v1332
      %v1338 = vld [vmem:[%s1 + $0x1] sm:$0x1]
      %v1339 = vlaneseq
      %v1340 = vshrl.u32 %v1339, 7
      %v1341 = vsub.s32 0, %v1340
      %v1342 = vrot.slane %v1338, %v1341
      %v1343 = vpack.c.bf16 %v802, %v802
      %1345 = vrot.lane.b32.xlu0 %v1343, 96
      %v1346 = vpop.permute.xlu0 %1345
      %v1348 = vsel %vm818, %v1343, 0
      %v1351 = vsel %vm818, %v1346, 0
      %1353 = vmatprep.subr.bf16.mxu0 0
      %1354 = vmatpush1.bf16.xpose.msra.mxu0 %v1351
      %1355 = vmatprep.subr.bf16.mxu0 0
      %1356 = vmatpush1.bf16.xpose.msra.mxu0 0
      %1357 = vmatprep.subr.bf16.mxu0 0
      %1358 = vmatpush1.bf16.xpose.msra.mxu0 0
      %1359 = vmatprep.subr.bf16.mxu0 0
      %1360 = vmatpush1.bf16.xpose.msra.mxu0 0
      %1361 = vmatprep.subr.bf16.mxu0 0
      %1362 = vmatpush1.bf16.xpose.msra.mxu0 0
      %1363 = vmatprep.subr.bf16.mxu0 0
      %1364 = vmatpush1.bf16.xpose.msra.mxu0 0
      %1365 = vmatprep.subr.bf16.mxu0 0
      %1366 = vmatpush1.bf16.xpose.msra.mxu0 0
      %1367 = vmatprep.subr.bf16.mxu0 0
      %1368 = vmatpush1.bf16.xpose.msra.mxu0 0
      %1369 = vmatprep.subr.bf16.mxu0 0
      %1370 = vmatpush1.bf16.xpose.msra.mxu0 0
      %1371 = vmatprep.subr.bf16.mxu0 0
      %1372 = vmatpush1.bf16.xpose.msra.mxu0 0
      %1373 = vmatprep.subr.bf16.mxu0 0
      %1374 = vmatpush1.bf16.xpose.msra.mxu0 0
      %1375 = vmatprep.subr.bf16.mxu0 0
      %1376 = vmatpush1.bf16.xpose.msra.mxu0 0
      %1377 = vmatprep.subr.bf16.mxu0 0
      %1378 = vmatpush1.bf16.xpose.msra.mxu0 0
      %1379 = vmatprep.subr.bf16.mxu0 0
      %1380 = vmatpush1.bf16.xpose.msra.mxu0 0
      %1381 = vmatprep.subr.bf16.mxu0 0
      %1382 = vmatpush1.bf16.xpose.msra.mxu0 0
      %1383 = vmatprep.subr.bf16.mxu0 0
      %1384 = vmatpush1.bf16.xpose.msra.mxu0 0
      %1385 = vmatprep.mubr.bf16.mxu0 0
      %1386 = vmatmul.mubr.bf16.gmra.mrb[0].mxu0 %v1348
      %v1387 = vpop.f32.mrb[0].mxu0
      %v1388 = vadd.f32 0.0, %v1387
      %v1389 = vpop.f32.mrb[0].mxu0
      %v1390 = vpop.f32.mrb[0].mxu0
      %v1391 = vpop.f32.mrb[0].mxu0
      %1392 = vdwg.mxu0
      %v1393 = vmul.f32 %v1388, 0.35355338
      %v1394 = vadd.f32 %v1393, %v1342
      %v1395 = vsel %vm818, %v1394, -inf
      %1396 = vmax.xlane.f32.xlu0 %v1395
      %v1397 = vpop.xlane.xlu0 %1396
      %v1398 = vsub.f32 %v1394, %v1397
      %v1399 = vmul.f32 %v1398, 1.442695
      %v1400 = vpow.pop %v1399
      %v1401 = vsel %vm818, %v1400, 0.0
      %1402 = vadd.xlane.f32.xlu0 %v1401
      %v1403 = vpop.xlane.xlu0 %1402
      %v1404 = vrcp.pop %v1403
      %v1405 = vmul.f32 %v1400, %v1404
      %v1406 = vpack.c.bf16 %v1405, %v1405
      %1407 = vrot.lane.b32.xlu0 %v1343, 64
      %v1408 = vpop.permute.xlu0 %1407
      %v1410 = vsel %vm818, %v1406, 0
      %v1413 = vsel %vm884, %v1408, 0
      %1415 = vmatprep.subr.bf16.mxu0 0
      %1416 = vmatpush1.bf16.msra.mxu0 %v1413
      %1417 = vmatprep.subr.bf16.mxu0 0
      %1418 = vmatpush1.bf16.msra.mxu0 0
      %1419 = vmatprep.subr.bf16.mxu0 0
      %1420 = vmatpush1.bf16.msra.mxu0 0
      %1421 = vmatprep.subr.bf16.mxu0 0
      %1422 = vmatpush1.bf16.msra.mxu0 0
      %1423 = vmatprep.subr.bf16.mxu0 0
      %1424 = vmatpush1.bf16.msra.mxu0 0
      %1425 = vmatprep.subr.bf16.mxu0 0
      %1426 = vmatpush1.bf16.msra.mxu0 0
      %1427 = vmatprep.subr.bf16.mxu0 0
      %1428 = vmatpush1.bf16.msra.mxu0 0
      %1429 = vmatprep.subr.bf16.mxu0 0
      %1430 = vmatpush1.bf16.msra.mxu0 0
      %1431 = vmatprep.subr.bf16.mxu0 0
      %1432 = vmatpush1.bf16.msra.mxu0 0
      %1433 = vmatprep.subr.bf16.mxu0 0
      %1434 = vmatpush1.bf16.msra.mxu0 0
      %1435 = vmatprep.subr.bf16.mxu0 0
      %1436 = vmatpush1.bf16.msra.mxu0 0
      %1437 = vmatprep.subr.bf16.mxu0 0
      %1438 = vmatpush1.bf16.msra.mxu0 0
      %1439 = vmatprep.subr.bf16.mxu0 0
      %1440 = vmatpush1.bf16.msra.mxu0 0
      %1441 = vmatprep.subr.bf16.mxu0 0
      %1442 = vmatpush1.bf16.msra.mxu0 0
      %1443 = vmatprep.subr.bf16.mxu0 0
      %1444 = vmatpush1.bf16.msra.mxu0 0
      %1445 = vmatprep.subr.bf16.mxu0 0
      %1446 = vmatpush1.bf16.msra.mxu0 0
      %1447 = vmatprep.mubr.bf16.mxu0 0
      %1448 = vmatmul.mubr.bf16.gmra.mrb[0].mxu0 %v1410
      %v1449 = vpop.f32.mrb[0].mxu0
      %v1450 = vadd.f32 0.0, %v1449
      %v1451 = vpop.f32.mrb[0].mxu0
      %v1452 = vpop.f32.mrb[0].mxu0
      %v1453 = vpop.f32.mrb[0].mxu0
      %1454 = vdwg.mxu0
      %1455 = vrot.lane.b32.xlu0 %v1343, 120
      %v1456 = vpop.permute.xlu0 %1455
      %1457 = vrot.lane.b32.xlu0 %v1343, 88
      %v1458 = vpop.permute.xlu0 %1457
      %v1460 = vsel %vm818, %v1456, 0
      %v1463 = vsel %vm818, %v1458, 0
      %1465 = vmatprep.subr.bf16.mxu0 0
      %1466 = vmatpush1.bf16.xpose.msra.mxu0 %v1463
      %1467 = vmatprep.subr.bf16.mxu0 0
      %1468 = vmatpush1.bf16.xpose.msra.mxu0 0
      %1469 = vmatprep.subr.bf16.mxu0 0
      %1470 = vmatpush1.bf16.xpose.msra.mxu0 0
      %1471 = vmatprep.subr.bf16.mxu0 0
      %1472 = vmatpush1.bf16.xpose.msra.mxu0 0
      %1473 = vmatprep.subr.bf16.mxu0 0
      %1474 = vmatpush1.bf16.xpose.msra.mxu0 0
      %1475 = vmatprep.subr.bf16.mxu0 0
      %1476 = vmatpush1.bf16.xpose.msra.mxu0 0
      %1477 = vmatprep.subr.bf16.mxu0 0
      %1478 = vmatpush1.bf16.xpose.msra.mxu0 0
      %1479 = vmatprep.subr.bf16.mxu0 0
      %1480 = vmatpush1.bf16.xpose.msra.mxu0 0
      %1481 = vmatprep.subr.bf16.mxu0 0
      %1482 = vmatpush1.bf16.xpose.msra.mxu0 0
      %1483 = vmatprep.subr.bf16.mxu0 0
      %1484 = vmatpush1.bf16.xpose.msra.mxu0 0
      %1485 = vmatprep.subr.bf16.mxu0 0
      %1486 = vmatpush1.bf16.xpose.msra.mxu0 0
      %1487 = vmatprep.subr.bf16.mxu0 0
      %1488 = vmatpush1.bf16.xpose.msra.mxu0 0
      %1489 = vmatprep.subr.bf16.mxu0 0
      %1490 = vmatpush1.bf16.xpose.msra.mxu0 0
      %1491 = vmatprep.subr.bf16.mxu0 0
      %1492 = vmatpush1.bf16.xpose.msra.mxu0 0
      %1493 = vmatprep.subr.bf16.mxu0 0
      %1494 = vmatpush1.bf16.xpose.msra.mxu0 0
      %1495 = vmatprep.subr.bf16.mxu0 0
      %1496 = vmatpush1.bf16.xpose.msra.mxu0 0
      %1497 = vmatprep.mubr.bf16.mxu0 0
      %1498 = vmatmul.mubr.bf16.gmra.mrb[0].mxu0 %v1460
      %v1499 = vpop.f32.mrb[0].mxu0
      %v1500 = vadd.f32 0.0, %v1499
      %v1501 = vpop.f32.mrb[0].mxu0
      %v1502 = vpop.f32.mrb[0].mxu0
      %v1503 = vpop.f32.mrb[0].mxu0
      %1504 = vdwg.mxu0
      %v1505 = vmul.f32 %v1500, 0.35355338
      %v1506 = vadd.f32 %v1505, %v1342
      %v1507 = vsel %vm818, %v1506, -inf
      %1508 = vmax.xlane.f32.xlu0 %v1507
      %v1509 = vpop.xlane.xlu0 %1508
      %v1510 = vsub.f32 %v1506, %v1509
      %v1511 = vmul.f32 %v1510, 1.442695
      %v1512 = vpow.pop %v1511
      %v1513 = vsel %vm818, %v1512, 0.0
      %1514 = vadd.xlane.f32.xlu0 %v1513
      %v1515 = vpop.xlane.xlu0 %1514
      %v1516 = vrcp.pop %v1515
      %v1517 = vmul.f32 %v1512, %v1516
      %v1518 = vpack.c.bf16 %v1517, %v1517
      %1519 = vrot.lane.b32.xlu0 %v1343, 56
      %v1520 = vpop.permute.xlu0 %1519
      %v1522 = vsel %vm818, %v1518, 0
      %v1525 = vsel %vm884, %v1520, 0
      %1527 = vmatprep.subr.bf16.mxu0 0
      %1528 = vmatpush1.bf16.msra.mxu0 %v1525
      %1529 = vmatprep.subr.bf16.mxu0 0
      %1530 = vmatpush1.bf16.msra.mxu0 0
      %1531 = vmatprep.subr.bf16.mxu0 0
      %1532 = vmatpush1.bf16.msra.mxu0 0
      %1533 = vmatprep.subr.bf16.mxu0 0
      %1534 = vmatpush1.bf16.msra.mxu0 0
      %1535 = vmatprep.subr.bf16.mxu0 0
      %1536 = vmatpush1.bf16.msra.mxu0 0
      %1537 = vmatprep.subr.bf16.mxu0 0
      %1538 = vmatpush1.bf16.msra.mxu0 0
      %1539 = vmatprep.subr.bf16.mxu0 0
      %1540 = vmatpush1.bf16.msra.mxu0 0
      %1541 = vmatprep.subr.bf16.mxu0 0
      %1542 = vmatpush1.bf16.msra.mxu0 0
      %1543 = vmatprep.subr.bf16.mxu0 0
      %1544 = vmatpush1.bf16.msra.mxu0 0
      %1545 = vmatprep.subr.bf16.mxu0 0
      %1546 = vmatpush1.bf16.msra.mxu0 0
      %1547 = vmatprep.subr.bf16.mxu0 0
      %1548 = vmatpush1.bf16.msra.mxu0 0
      %1549 = vmatprep.subr.bf16.mxu0 0
      %1550 = vmatpush1.bf16.msra.mxu0 0
      %1551 = vmatprep.subr.bf16.mxu0 0
      %1552 = vmatpush1.bf16.msra.mxu0 0
      %1553 = vmatprep.subr.bf16.mxu0 0
      %1554 = vmatpush1.bf16.msra.mxu0 0
      %1555 = vmatprep.subr.bf16.mxu0 0
      %1556 = vmatpush1.bf16.msra.mxu0 0
      %1557 = vmatprep.subr.bf16.mxu0 0
      %1558 = vmatpush1.bf16.msra.mxu0 0
      %1559 = vmatprep.mubr.bf16.mxu0 0
      %1560 = vmatmul.mubr.bf16.gmra.mrb[0].mxu0 %v1522
      %v1561 = vpop.f32.mrb[0].mxu0
      %v1562 = vadd.f32 0.0, %v1561
      %v1563 = vpop.f32.mrb[0].mxu0
      %v1564 = vpop.f32.mrb[0].mxu0
      %v1565 = vpop.f32.mrb[0].mxu0
      %1566 = vdwg.mxu0
      %1567 = vrot.lane.b32.xlu0 %v1343, 112
      %v1568 = vpop.permute.xlu0 %1567
      %1569 = vrot.lane.b32.xlu0 %v1343, 80
      %v1570 = vpop.permute.xlu0 %1569
      %v1572 = vsel %vm818, %v1568, 0
      %v1575 = vsel %vm818, %v1570, 0
      %1577 = vmatprep.subr.bf16.mxu0 0
      %1578 = vmatpush1.bf16.xpose.msra.mxu0 %v1575
      %1579 = vmatprep.subr.bf16.mxu0 0
      %1580 = vmatpush1.bf16.xpose.msra.mxu0 0
      %1581 = vmatprep.subr.bf16.mxu0 0
      %1582 = vmatpush1.bf16.xpose.msra.mxu0 0
      %1583 = vmatprep.subr.bf16.mxu0 0
      %1584 = vmatpush1.bf16.xpose.msra.mxu0 0
      %1585 = vmatprep.subr.bf16.mxu0 0
      %1586 = vmatpush1.bf16.xpose.msra.mxu0 0
      %1587 = vmatprep.subr.bf16.mxu0 0
      %1588 = vmatpush1.bf16.xpose.msra.mxu0 0
      %1589 = vmatprep.subr.bf16.mxu0 0
      %1590 = vmatpush1.bf16.xpose.msra.mxu0 0
      %1591 = vmatprep.subr.bf16.mxu0 0
      %1592 = vmatpush1.bf16.xpose.msra.mxu0 0
      %1593 = vmatprep.subr.bf16.mxu0 0
      %1594 = vmatpush1.bf16.xpose.msra.mxu0 0
      %1595 = vmatprep.subr.bf16.mxu0 0
      %1596 = vmatpush1.bf16.xpose.msra.mxu0 0
      %1597 = vmatprep.subr.bf16.mxu0 0
      %1598 = vmatpush1.bf16.xpose.msra.mxu0 0
      %1599 = vmatprep.subr.bf16.mxu0 0
      %1600 = vmatpush1.bf16.xpose.msra.mxu0 0
      %1601 = vmatprep.subr.bf16.mxu0 0
      %1602 = vmatpush1.bf16.xpose.msra.mxu0 0
      %1603 = vmatprep.subr.bf16.mxu0 0
      %1604 = vmatpush1.bf16.xpose.msra.mxu0 0
      %1605 = vmatprep.subr.bf16.mxu0 0
      %1606 = vmatpush1.bf16.xpose.msra.mxu0 0
      %1607 = vmatprep.subr.bf16.mxu0 0
      %1608 = vmatpush1.bf16.xpose.msra.mxu0 0
      %1609 = vmatprep.mubr.bf16.mxu0 0
      %1610 = vmatmul.mubr.bf16.gmra.mrb[0].mxu0 %v1572
      %v1611 = vpop.f32.mrb[0].mxu0
      %v1612 = vadd.f32 0.0, %v1611
      %v1613 = vpop.f32.mrb[0].mxu0
      %v1614 = vpop.f32.mrb[0].mxu0
      %v1615 = vpop.f32.mrb[0].mxu0
      %1616 = vdwg.mxu0
      %v1617 = vmul.f32 %v1612, 0.35355338
      %v1618 = vadd.f32 %v1617, %v1342
      %v1619 = vsel %vm818, %v1618, -inf
      %1620 = vmax.xlane.f32.xlu0 %v1619
      %v1621 = vpop.xlane.xlu0 %1620
      %v1622 = vsub.f32 %v1618, %v1621
      %v1623 = vmul.f32 %v1622, 1.442695
      %v1624 = vpow.pop %v1623
      %v1625 = vsel %vm818, %v1624, 0.0
      %1626 = vadd.xlane.f32.xlu0 %v1625
      %v1627 = vpop.xlane.xlu0 %1626
      %v1628 = vrcp.pop %v1627
      %v1629 = vmul.f32 %v1624, %v1628
      %v1630 = vpack.c.bf16 %v1629, %v1629
      %1631 = vrot.lane.b32.xlu0 %v1343, 48
      %v1632 = vpop.permute.xlu0 %1631
      %v1634 = vsel %vm818, %v1630, 0
      %v1637 = vsel %vm884, %v1632, 0
      %1639 = vmatprep.subr.bf16.mxu0 0
      %1640 = vmatpush1.bf16.msra.mxu0 %v1637
      %1641 = vmatprep.subr.bf16.mxu0 0
      %1642 = vmatpush1.bf16.msra.mxu0 0
      %1643 = vmatprep.subr.bf16.mxu0 0
      %1644 = vmatpush1.bf16.msra.mxu0 0
      %1645 = vmatprep.subr.bf16.mxu0 0
      %1646 = vmatpush1.bf16.msra.mxu0 0
      %1647 = vmatprep.subr.bf16.mxu0 0
      %1648 = vmatpush1.bf16.msra.mxu0 0
      %1649 = vmatprep.subr.bf16.mxu0 0
      %1650 = vmatpush1.bf16.msra.mxu0 0
      %1651 = vmatprep.subr.bf16.mxu0 0
      %1652 = vmatpush1.bf16.msra.mxu0 0
      %1653 = vmatprep.subr.bf16.mxu0 0
      %1654 = vmatpush1.bf16.msra.mxu0 0
      %1655 = vmatprep.subr.bf16.mxu0 0
      %1656 = vmatpush1.bf16.msra.mxu0 0
      %1657 = vmatprep.subr.bf16.mxu0 0
      %1658 = vmatpush1.bf16.msra.mxu0 0
      %1659 = vmatprep.subr.bf16.mxu0 0
      %1660 = vmatpush1.bf16.msra.mxu0 0
      %1661 = vmatprep.subr.bf16.mxu0 0
      %1662 = vmatpush1.bf16.msra.mxu0 0
      %1663 = vmatprep.subr.bf16.mxu0 0
      %1664 = vmatpush1.bf16.msra.mxu0 0
      %1665 = vmatprep.subr.bf16.mxu0 0
      %1666 = vmatpush1.bf16.msra.mxu0 0
      %1667 = vmatprep.subr.bf16.mxu0 0
      %1668 = vmatpush1.bf16.msra.mxu0 0
      %1669 = vmatprep.subr.bf16.mxu0 0
      %1670 = vmatpush1.bf16.msra.mxu0 0
      %1671 = vmatprep.mubr.bf16.mxu0 0
      %1672 = vmatmul.mubr.bf16.gmra.mrb[0].mxu0 %v1634
      %v1673 = vpop.f32.mrb[0].mxu0
      %v1674 = vadd.f32 0.0, %v1673
      %v1675 = vpop.f32.mrb[0].mxu0
      %v1676 = vpop.f32.mrb[0].mxu0
      %v1677 = vpop.f32.mrb[0].mxu0
      %1678 = vdwg.mxu0
      %1679 = vrot.lane.b32.xlu0 %v1343, 104
      %v1680 = vpop.permute.xlu0 %1679
      %1681 = vrot.lane.b32.xlu0 %v1343, 72
      %v1682 = vpop.permute.xlu0 %1681
      %v1684 = vsel %vm818, %v1680, 0
      %v1687 = vsel %vm818, %v1682, 0
      %1689 = vmatprep.subr.bf16.mxu0 0
      %1690 = vmatpush1.bf16.xpose.msra.mxu0 %v1687
      %1691 = vmatprep.subr.bf16.mxu0 0
      %1692 = vmatpush1.bf16.xpose.msra.mxu0 0
      %1693 = vmatprep.subr.bf16.mxu0 0
      %1694 = vmatpush1.bf16.xpose.msra.mxu0 0
      %1695 = vmatprep.subr.bf16.mxu0 0
      %1696 = vmatpush1.bf16.xpose.msra.mxu0 0
      %1697 = vmatprep.subr.bf16.mxu0 0
      %1698 = vmatpush1.bf16.xpose.msra.mxu0 0
      %1699 = vmatprep.subr.bf16.mxu0 0
      %1700 = vmatpush1.bf16.xpose.msra.mxu0 0
      %1701 = vmatprep.subr.bf16.mxu0 0
      %1702 = vmatpush1.bf16.xpose.msra.mxu0 0
      %1703 = vmatprep.subr.bf16.mxu0 0
      %1704 = vmatpush1.bf16.xpose.msra.mxu0 0
      %1705 = vmatprep.subr.bf16.mxu0 0
      %1706 = vmatpush1.bf16.xpose.msra.mxu0 0
      %1707 = vmatprep.subr.bf16.mxu0 0
      %1708 = vmatpush1.bf16.xpose.msra.mxu0 0
      %1709 = vmatprep.subr.bf16.mxu0 0
      %1710 = vmatpush1.bf16.xpose.msra.mxu0 0
      %1711 = vmatprep.subr.bf16.mxu0 0
      %1712 = vmatpush1.bf16.xpose.msra.mxu0 0
      %1713 = vmatprep.subr.bf16.mxu0 0
      %1714 = vmatpush1.bf16.xpose.msra.mxu0 0
      %1715 = vmatprep.subr.bf16.mxu0 0
      %1716 = vmatpush1.bf16.xpose.msra.mxu0 0
      %1717 = vmatprep.subr.bf16.mxu0 0
      %1718 = vmatpush1.bf16.xpose.msra.mxu0 0
      %1719 = vmatprep.subr.bf16.mxu0 0
      %1720 = vmatpush1.bf16.xpose.msra.mxu0 0
      %1721 = vmatprep.mubr.bf16.mxu0 0
      %1722 = vmatmul.mubr.bf16.gmra.mrb[0].mxu0 %v1684
      %v1723 = vpop.f32.mrb[0].mxu0
      %v1724 = vadd.f32 0.0, %v1723
      %v1725 = vpop.f32.mrb[0].mxu0
      %v1726 = vpop.f32.mrb[0].mxu0
      %v1727 = vpop.f32.mrb[0].mxu0
      %1728 = vdwg.mxu0
      %v1729 = vmul.f32 %v1724, 0.35355338
      %v1730 = vadd.f32 %v1729, %v1342
      %v1731 = vsel %vm818, %v1730, -inf
      %1732 = vmax.xlane.f32.xlu0 %v1731
      %v1733 = vpop.xlane.xlu0 %1732
      %v1734 = vsub.f32 %v1730, %v1733
      %v1735 = vmul.f32 %v1734, 1.442695
      %v1736 = vpow.pop %v1735
      %v1737 = vsel %vm818, %v1736, 0.0
      %1738 = vadd.xlane.f32.xlu0 %v1737
      %v1739 = vpop.xlane.xlu0 %1738
      %v1740 = vrcp.pop %v1739
      %v1741 = vmul.f32 %v1736, %v1740
      %v1742 = vpack.c.bf16 %v1741, %v1741
      %1743 = vrot.lane.b32.xlu0 %v1343, 40
      %v1744 = vpop.permute.xlu0 %1743
      %v1746 = vsel %vm818, %v1742, 0
      %v1749 = vsel %vm884, %v1744, 0
      %1751 = vmatprep.subr.bf16.mxu0 0
      %1752 = vmatpush1.bf16.msra.mxu0 %v1749
      %1753 = vmatprep.subr.bf16.mxu0 0
      %1754 = vmatpush1.bf16.msra.mxu0 0
      %1755 = vmatprep.subr.bf16.mxu0 0
      %1756 = vmatpush1.bf16.msra.mxu0 0
      %1757 = vmatprep.subr.bf16.mxu0 0
      %1758 = vmatpush1.bf16.msra.mxu0 0
      %1759 = vmatprep.subr.bf16.mxu0 0
      %1760 = vmatpush1.bf16.msra.mxu0 0
      %1761 = vmatprep.subr.bf16.mxu0 0
      %1762 = vmatpush1.bf16.msra.mxu0 0
      %1763 = vmatprep.subr.bf16.mxu0 0
      %1764 = vmatpush1.bf16.msra.mxu0 0
      %1765 = vmatprep.subr.bf16.mxu0 0
      %1766 = vmatpush1.bf16.msra.mxu0 0
      %1767 = vmatprep.subr.bf16.mxu0 0
      %1768 = vmatpush1.bf16.msra.mxu0 0
      %1769 = vmatprep.subr.bf16.mxu0 0
      %1770 = vmatpush1.bf16.msra.mxu0 0
      %1771 = vmatprep.subr.bf16.mxu0 0
      %1772 = vmatpush1.bf16.msra.mxu0 0
      %1773 = vmatprep.subr.bf16.mxu0 0
      %1774 = vmatpush1.bf16.msra.mxu0 0
      %1775 = vmatprep.subr.bf16.mxu0 0
      %1776 = vmatpush1.bf16.msra.mxu0 0
      %1777 = vmatprep.subr.bf16.mxu0 0
      %1778 = vmatpush1.bf16.msra.mxu0 0
      %1779 = vmatprep.subr.bf16.mxu0 0
      %1780 = vmatpush1.bf16.msra.mxu0 0
      %1781 = vmatprep.subr.bf16.mxu0 0
      %1782 = vmatpush1.bf16.msra.mxu0 0
      %1783 = vmatprep.mubr.bf16.mxu0 0
      %1784 = vmatmul.mubr.bf16.gmra.mrb[0].mxu0 %v1746
      %v1785 = vpop.f32.mrb[0].mxu0
      %v1786 = vadd.f32 0.0, %v1785
      %v1787 = vpop.f32.mrb[0].mxu0
      %v1788 = vpop.f32.mrb[0].mxu0
      %v1789 = vpop.f32.mrb[0].mxu0
      %1790 = vdwg.mxu0
      %1792 = vrot.lane.b32.xlu0 %v1562, 8
      %v1793 = vpop.permute.xlu0 %1792
      %1796 = vrot.lane.b32.xlu0 %v1674, 16
      %v1797 = vpop.permute.xlu0 %1796
      %1800 = vrot.lane.b32.xlu0 %v1786, 24
      %v1801 = vpop.permute.xlu0 %1800
      %v1803 = vsel %vm818, %v1450, %v1793
      %v1804 = vsel %vm1277, %v1803, %v1797
      %v1805 = vsel %vm1279, %v1804, %v1801
      %v1806 = vpack.c.bf16 %v1805, %v1805
      %v1808 = vsel %vm760, %v1806, 0
      %1810 = vmatprep.subr.bf16.mxu0 0
      %1811 = vmatpush1.bf16.msra.mxu0 %v1290
      %1812 = vmatprep.subr.bf16.mxu0 0
      %1813 = vmatpush1.bf16.msra.mxu0 %v1291
      %1814 = vmatprep.subr.bf16.mxu0 0
      %1815 = vmatpush1.bf16.msra.mxu0 0
      %1816 = vmatprep.subr.bf16.mxu0 0
      %1817 = vmatpush1.bf16.msra.mxu0 0
      %1818 = vmatprep.subr.bf16.mxu0 0
      %1819 = vmatpush1.bf16.msra.mxu0 0
      %1820 = vmatprep.subr.bf16.mxu0 0
      %1821 = vmatpush1.bf16.msra.mxu0 0
      %1822 = vmatprep.subr.bf16.mxu0 0
      %1823 = vmatpush1.bf16.msra.mxu0 0
      %1824 = vmatprep.subr.bf16.mxu0 0
      %1825 = vmatpush1.bf16.msra.mxu0 0
      %1826 = vmatprep.subr.bf16.mxu0 0
      %1827 = vmatpush1.bf16.msra.mxu0 0
      %1828 = vmatprep.subr.bf16.mxu0 0
      %1829 = vmatpush1.bf16.msra.mxu0 0
      %1830 = vmatprep.subr.bf16.mxu0 0
      %1831 = vmatpush1.bf16.msra.mxu0 0
      %1832 = vmatprep.subr.bf16.mxu0 0
      %1833 = vmatpush1.bf16.msra.mxu0 0
      %1834 = vmatprep.subr.bf16.mxu0 0
      %1835 = vmatpush1.bf16.msra.mxu0 0
      %1836 = vmatprep.subr.bf16.mxu0 0
      %1837 = vmatpush1.bf16.msra.mxu0 0
      %1838 = vmatprep.subr.bf16.mxu0 0
      %1839 = vmatpush1.bf16.msra.mxu0 0
      %1840 = vmatprep.subr.bf16.mxu0 0
      %1841 = vmatpush1.bf16.msra.mxu0 0
      %1842 = vmatprep.mubr.bf16.mxu0 0
      %1843 = vmatmul.mubr.bf16.gmra.mrb[0].mxu0 %v1808
      %v1844 = vpop.f32.mrb[0].mxu0
      %v1845 = vadd.f32 0.0, %v1844
      %v1846 = vpop.f32.mrb[0].mxu0
      %v1847 = vpop.f32.mrb[0].mxu0
      %v1848 = vpop.f32.mrb[0].mxu0
      %1849 = vdwg.mxu0
      %1850 = vst.msk [vmem:[#allocation3 + $0x8] sm:$0xff] %vm760, %v1845
      %v1851 = vld [vmem:[#allocation3] sm:$0xff]
      %v1852 = vld [vmem:[#allocation3 + $0x8] sm:$0xff]
      %v1853 = vld [vmem:[%s650] sm:$0x1]
      %v1855 = vlaneseq
      %v1856 = vshrl.u32 %v1855, 7
      %v1857 = vsub.s32 0, %v1856
      %v1858 = vrot.slane %v1853, %v1857
      %v1860 = vadd.f32 %v1851, %v1858
      %v1861 = vadd.f32 %v1852, %v1858
      %v1862 = vadd.f32 %v1860, %v734
      %v1863 = vadd.f32 %v1861, %v735
      %v1864 = vld [vmem:[%s653] sm:$0x1]
      %v1865 = vld [vmem:[%s656] sm:$0x1]
      %v1866 = vsel %vm760, %v1862, 0.0
      %1867 = vadd.xlane.f32.xlu0 %v1866
      %v1868 = vpop.xlane.xlu0 %1867
      %v1869 = vsel %vm760, %v1863, 0.0
      %1870 = vadd.xlane.f32.xlu0 %v1869
      %v1871 = vpop.xlane.xlu0 %1870
      %v1872 = vrcp.pop 32.0
      %v1873 = vmul.f32 %v1868, %v1872
      %v1874 = vmul.f32 %v1871, %v1872
      %v1875 = vsub.f32 %v1862, %v1873
      %v1876 = vsub.f32 %v1863, %v1874
      %v1877 = vmul.f32 %v1875, %v1875
      %v1878 = vmul.f32 %v1876, %v1876
      %v1879 = vsel %vm760, %v1877, 0.0
      %1880 = vadd.xlane.f32.xlu0 %v1879
      %v1881 = vpop.xlane.xlu0 %1880
      %v1882 = vsel %vm760, %v1878, 0.0
      %1883 = vadd.xlane.f32.xlu0 %v1882
      %v1884 = vpop.xlane.xlu0 %1883
      %v1885 = vmul.f32 %v1881, %v1872
      %v1886 = vmul.f32 %v1884, %v1872
      %v1887 = vadd.f32 %v1885, 1e-12
      %v1888 = vadd.f32 %v1886, 1e-12
      %v1889 = vrsqrt.pop %v1887
      %v1890 = vrsqrt.pop %v1888
      %v1891 = vmul.f32 %v1875, %v1889
      %v1892 = vmul.f32 %v1876, %v1890
      %v1894 = vlaneseq
      %v1895 = vshrl.u32 %v1894, 7
      %v1896 = vsub.s32 0, %v1895
      %v1897 = vrot.slane %v1864, %v1896
      %v1899 = vmul.f32 %v1891, %v1897
      %v1900 = vmul.f32 %v1892, %v1897
      %v1902 = vlaneseq
      %v1903 = vshrl.u32 %v1902, 7
      %v1904 = vsub.s32 0, %v1903
      %v1905 = vrot.slane %v1865, %v1904
      %v1907 = vadd.f32 %v1899, %v1905
      %v1908 = vadd.f32 %v1900, %v1905
      %v1909 = vpack.c.bf16 %v1908, %v1907
      %v1910 = vld [vmem:[%s661] sm:$0xf]
      %v1911 = vld [vmem:[%s661 + $0x4] sm:$0xf]
      %v1912 = vld [vmem:[%s661 + $0x8] sm:$0xf]
      %v1913 = vld [vmem:[%s661 + $0xc] sm:$0xf]
      %v1914 = vld [vmem:[%s664] sm:$0x1]
      %v1916 = vlaneseq
      %v1917 = vshrl.u32 %v1916, 7
      %v1918 = vsub.s32 0, %v1917
      %v1919 = vrot.slane %v1914, %v1918
      %v1925 = vunpack.c.l.b16 %v1910
      %v1926 = vunpack.c.l.b16 %v1911
      %v1927 = vunpack.c.l.b16 %v1912
      %v1928 = vunpack.c.l.b16 %v1913
      %v1929 = vpack.c.b16 %v1926, %v1925
      %v1930 = vpack.c.b16 %v1928, %v1927
      %v1934 = vsel %vm760, %v1909, 0
      %1936 = vmatprep.subr.bf16.mxu0 0
      %1937 = vmatpush1.bf16.msra.mxu0 %v1929
      %1938 = vmatprep.subr.bf16.mxu0 0
      %1939 = vmatpush1.bf16.msra.mxu0 %v1930
      %1940 = vmatprep.subr.bf16.mxu0 0
      %1941 = vmatpush1.bf16.msra.mxu0 0
      %1942 = vmatprep.subr.bf16.mxu0 0
      %1943 = vmatpush1.bf16.msra.mxu0 0
      %1944 = vmatprep.subr.bf16.mxu0 0
      %1945 = vmatpush1.bf16.msra.mxu0 0
      %1946 = vmatprep.subr.bf16.mxu0 0
      %1947 = vmatpush1.bf16.msra.mxu0 0
      %1948 = vmatprep.subr.bf16.mxu0 0
      %1949 = vmatpush1.bf16.msra.mxu0 0
      %1950 = vmatprep.subr.bf16.mxu0 0
      %1951 = vmatpush1.bf16.msra.mxu0 0
      %1952 = vmatprep.subr.bf16.mxu0 0
      %1953 = vmatpush1.bf16.msra.mxu0 0
      %1954 = vmatprep.subr.bf16.mxu0 0
      %1955 = vmatpush1.bf16.msra.mxu0 0
      %1956 = vmatprep.subr.bf16.mxu0 0
      %1957 = vmatpush1.bf16.msra.mxu0 0
      %1958 = vmatprep.subr.bf16.mxu0 0
      %1959 = vmatpush1.bf16.msra.mxu0 0
      %1960 = vmatprep.subr.bf16.mxu0 0
      %1961 = vmatpush1.bf16.msra.mxu0 0
      %1962 = vmatprep.subr.bf16.mxu0 0
      %1963 = vmatpush1.bf16.msra.mxu0 0
      %1964 = vmatprep.subr.bf16.mxu0 0
      %1965 = vmatpush1.bf16.msra.mxu0 0
      %1966 = vmatprep.subr.bf16.mxu0 0
      %1967 = vmatpush1.bf16.msra.mxu0 0
      %1968 = vmatprep.mubr.bf16.mxu0 0
      %1969 = vmatmul.mubr.bf16.gmra.mrb[0].mxu0 %v1934
      %v1970 = vpop.f32.mrb[0].mxu0
      %v1971 = vadd.f32 %v1919, %v1970
      %v1972 = vpop.f32.mrb[0].mxu0
      %v1973 = vpop.f32.mrb[0].mxu0
      %v1974 = vadd.f32 %v1919, %v1973
      %v1975 = vpop.f32.mrb[0].mxu0
      %1976 = vdwg.mxu0
      %v1977 = vmul.f32 %v1971, 0.5
      %v1978 = vmul.f32 %v1974, 0.5
      %v1979 = vmul.f32 %v1971, 0.044715
      %v1980 = vmul.f32 %v1974, 0.044715
      %v1981 = vmul.f32 %v1979, %v1971
      %v1982 = vmul.f32 %v1980, %v1974
      %v1983 = vmul.f32 %v1981, %v1971
      %v1984 = vmul.f32 %v1982, %v1974
      %v1985 = vadd.f32 %v1971, %v1983
      %v1986 = vadd.f32 %v1974, %v1984
      %v1987 = vmul.f32 %v1985, 0.7978846
      %v1988 = vmul.f32 %v1986, 0.7978846
      %v1989 = vtanh.pop %v1987
      %v1990 = vtanh.pop %v1988
      %v1991 = vadd.f32 %v1989, 1.0
      %v1992 = vadd.f32 %v1990, 1.0
      %v1993 = vmul.f32 %v1977, %v1991
      %v1994 = vmul.f32 %v1978, %v1992
      %v1995 = vpack.c.bf16 %v1994, %v1993
      %v1996 = vld [vmem:[%s669] sm:$0xf]
      %v1997 = vld [vmem:[%s669 + $0x4] sm:$0xf]
      %v1998 = vld [vmem:[%s669 + $0x8] sm:$0xf]
      %v1999 = vld [vmem:[%s669 + $0xc] sm:$0xf]
      %v2000 = vld [vmem:[%s669 + $0x10] sm:$0xf]
      %v2001 = vld [vmem:[%s669 + $0x14] sm:$0xf]
      %v2002 = vld [vmem:[%s669 + $0x18] sm:$0xf]
      %v2003 = vld [vmem:[%s669 + $0x1c] sm:$0xf]
      %v2004 = vld [vmem:[%s672] sm:$0x1]
      %v2006 = vlaneseq
      %v2007 = vshrl.u32 %v2006, 7
      %v2008 = vsub.s32 0, %v2007
      %v2009 = vrot.slane %v2004, %v2008
      %v2019 = vunpack.c.l.b16 %v1996
      %v2020 = vunpack.c.l.b16 %v1997
      %v2021 = vunpack.c.l.b16 %v1998
      %v2022 = vunpack.c.l.b16 %v1999
      %v2023 = vunpack.c.l.b16 %v2000
      %v2024 = vunpack.c.l.b16 %v2001
      %v2025 = vunpack.c.l.b16 %v2002
      %v2026 = vunpack.c.l.b16 %v2003
      %v2027 = vpack.c.b16 %v2020, %v2019
      %v2028 = vpack.c.b16 %v2022, %v2021
      %v2029 = vpack.c.b16 %v2024, %v2023
      %v2030 = vpack.c.b16 %v2026, %v2025
      %vm2035 = vcmask 523264
      %v2037 = vsel %vm2035, %v1995, 0
      %2039 = vmatprep.subr.bf16.mxu0 0
      %2040 = vmatpush1.bf16.msra.mxu0 %v2027
      %2041 = vmatprep.subr.bf16.mxu0 0
      %2042 = vmatpush1.bf16.msra.mxu0 %v2028
      %2043 = vmatprep.subr.bf16.mxu0 0
      %2044 = vmatpush1.bf16.msra.mxu0 %v2029
      %2045 = vmatprep.subr.bf16.mxu0 0
      %2046 = vmatpush1.bf16.msra.mxu0 %v2030
      %2047 = vmatprep.subr.bf16.mxu0 0
      %2048 = vmatpush1.bf16.msra.mxu0 0
      %2049 = vmatprep.subr.bf16.mxu0 0
      %2050 = vmatpush1.bf16.msra.mxu0 0
      %2051 = vmatprep.subr.bf16.mxu0 0
      %2052 = vmatpush1.bf16.msra.mxu0 0
      %2053 = vmatprep.subr.bf16.mxu0 0
      %2054 = vmatpush1.bf16.msra.mxu0 0
      %2055 = vmatprep.subr.bf16.mxu0 0
      %2056 = vmatpush1.bf16.msra.mxu0 0
      %2057 = vmatprep.subr.bf16.mxu0 0
      %2058 = vmatpush1.bf16.msra.mxu0 0
      %2059 = vmatprep.subr.bf16.mxu0 0
      %2060 = vmatpush1.bf16.msra.mxu0 0
      %2061 = vmatprep.subr.bf16.mxu0 0
      %2062 = vmatpush1.bf16.msra.mxu0 0
      %2063 = vmatprep.subr.bf16.mxu0 0
      %2064 = vmatpush1.bf16.msra.mxu0 0
      %2065 = vmatprep.subr.bf16.mxu0 0
      %2066 = vmatpush1.bf16.msra.mxu0 0
      %2067 = vmatprep.subr.bf16.mxu0 0
      %2068 = vmatpush1.bf16.msra.mxu0 0
      %2069 = vmatprep.subr.bf16.mxu0 0
      %2070 = vmatpush1.bf16.msra.mxu0 0
      %2071 = vmatprep.mubr.bf16.mxu0 0
      %2072 = vmatmul.mubr.bf16.gmra.mrb[0].mxu0 %v2037
      %v2073 = vpop.f32.mrb[0].mxu0
      %v2074 = vadd.f32 %v2009, %v2073
      %v2075 = vpop.f32.mrb[0].mxu0
      %v2076 = vpop.f32.mrb[0].mxu0
      %v2077 = vadd.f32 %v2009, %v2076
      %v2078 = vpop.f32.mrb[0].mxu0
      %2079 = vdwg.mxu0
      %v2080 = vadd.f32 %v2074, %v1907
      %v2081 = vadd.f32 %v2077, %v1908
      %v2082 = vld [vmem:[%s675] sm:$0x1]
      %v2083 = vld [vmem:[%s678] sm:$0x1]
      %v2084 = vsel %vm760, %v2080, 0.0
      %2085 = vadd.xlane.f32.xlu0 %v2084
      %v2086 = vpop.xlane.xlu0 %2085
      %v2087 = vsel %vm760, %v2081, 0.0
      %2088 = vadd.xlane.f32.xlu0 %v2087
      %v2089 = vpop.xlane.xlu0 %2088
      %v2090 = vmul.f32 %v2086, %v1872
      %v2091 = vmul.f32 %v2089, %v1872
      %v2092 = vsub.f32 %v2080, %v2090
      %v2093 = vsub.f32 %v2081, %v2091
      %v2094 = vmul.f32 %v2092, %v2092
      %v2095 = vmul.f32 %v2093, %v2093
      %v2096 = vsel %vm760, %v2094, 0.0
      %2097 = vadd.xlane.f32.xlu0 %v2096
      %v2098 = vpop.xlane.xlu0 %2097
      %v2099 = vsel %vm760, %v2095, 0.0
      %2100 = vadd.xlane.f32.xlu0 %v2099
      %v2101 = vpop.xlane.xlu0 %2100
      %v2102 = vmul.f32 %v2098, %v1872
      %v2103 = vmul.f32 %v2101, %v1872
      %v2104 = vadd.f32 %v2102, 1e-12
      %v2105 = vadd.f32 %v2103, 1e-12
      %v2106 = vrsqrt.pop %v2104
      %v2107 = vrsqrt.pop %v2105
      %v2108 = vmul.f32 %v2092, %v2106
      %v2109 = vmul.f32 %v2093, %v2107
      %v2111 = vlaneseq
      %v2112 = vshrl.u32 %v2111, 7
      %v2113 = vsub.s32 0, %v2112
      %v2114 = vrot.slane %v2082, %v2113
      %v2116 = vmul.f32 %v2108, %v2114
      %v2117 = vmul.f32 %v2109, %v2114
      %v2119 = vlaneseq
      %v2120 = vshrl.u32 %v2119, 7
      %v2121 = vsub.s32 0, %v2120
      %v2122 = vrot.slane %v2083, %v2121
      %v2124 = vadd.f32 %v2116, %v2122
      %v2125 = vadd.f32 %v2117, %v2122
      %2126 = vst.msk [vmem:[#allocation2] sm:$0xff] %vm760, %v2124
      %2127 = vst.msk [vmem:[#allocation2 + $0x8] sm:$0xff] %vm760, %v2125
      %2128 = vst.msk [vmem:[%s16] sm:$0xff] %vm760, %v2124
      %2129 = vst.msk [vmem:[%s16 + $0x8] sm:$0xff] %vm760, %v2125
      // Predicated region
      $region89: #{simple_bert_forward.1} parent=83 // pred_check
        %p2130 = pneg %p436
      $region90: #{simple_bert_forward.1} parent=83 // pred_check_branch
        %2132 = sbr.rel (%p2130) target = $region92
      $region91: #{simple_bert_forward.1} parent=83 // pred_region
        _
      $region92: #{simple_bert_forward.1} parent=83 // pred_fallthru
        _
      // Predicated region
      $region93: #{simple_bert_forward.1} parent=83 // pred_check
        %p2133 = pneg %p436
      $region94: #{simple_bert_forward.1} parent=83 // pred_check_branch
        %2135 = sbr.rel (%p2133) target = $region96
      $region95: #{simple_bert_forward.1} parent=83 // pred_region
        _
      $region96: #{simple_bert_forward.1} parent=83 // pred_fallthru
        _
    $region84: #{simple_bert_forward.1} parent=5 // pred_fallthru
      _
    %p2136 = scmp.le.s32.totalorder 2, %s22
    // Predicated region
    $region97: #{simple_bert_forward.1} parent=5 // pred_check
      %p2137 = pneg %p2136
    $region98: #{simple_bert_forward.1} parent=5 // pred_check_branch
      %2139 = sbr.rel (%p2137) target = $region100
    $region99: #{simple_bert_forward.1} parent=5 // pred_region
      %s2140 = ssub.s32 %s22, 2
    $region100: #{simple_bert_forward.1} parent=5 // pred_fallthru
      _
  $region6: #{simple_bert_forward.1} parent=0 // loop_footer
    %s26 = sadd.s32 1, %s22
  $region7: #{simple_bert_forward.1} parent=0 // loop_footer_branch
    %21 = sbr.rel target = $region3
  $region8: #{simple_bert_forward.1} parent=0 // loop_exit
    _

</llo_original>
